<compile_context>
chip_gen: v7x
topology: tpu7x:2x2x1
jax: 0.10.0
libtpu: 0.0.40
codegen_flags: <defaults>
</compile_context>

<pallas_src>
import jax
import jax.numpy as jnp
import numpy as np
from jax import lax
from jax.experimental import pallas as pl
from jax.experimental.pallas import tpu as pltpu


def _cdiv(a, b):
    return (a + b - 1) // b


def _round_up(x, m):
    return _cdiv(x, m) * m


def _vmem_capacity_bytes():
    try:
        return int(pltpu.get_tpu_info().vmem_capacity_bytes)
    except Exception:
        return 64 << 20  # conservative default (v7x per-TC VMEM)


def _smallest_divisor_at_least(n, lo):
    lo = max(int(lo), 1)
    for d in range(lo, int(n) + 1):
        if n % d == 0:
            return d
    return int(n)


# ----------------------------- Pallas kernel ------------------------------- #
def _make_kernel(KB, KBW, RT, OWp):
    PT = RT * OWp

    def kernel(main_ref, extra_ref, w_ref, ab_ref, o_ref):
        # main_ref : (1, RT, Wsp, Cs)   s2d input rows of this row tile (bf16/f32)
        # extra_ref: (1, RE, Wsp, Cs)   vertical halo (first rows of next tile)
        # w_ref    : (T, Cs, Cout)      per-tap weight matrices (resident)
        # ab_ref   : (1, 2, Cout)       fused scale / shift  (f32)
        # o_ref    : (1, 1, Cout, PT)   NCHW-flat output tile
        if KB > 1:
            band = jnp.concatenate([main_ref[0], extra_ref[0, :KB - 1]], axis=0)
        else:
            band = main_ref[0]                       # (RT + KB - 1, Wsp, Cs)

        acc = None
        for dkh in range(KB):                        # direct conv = sum of shifted matmuls
            for dkw in range(KBW):
                t = dkh * KBW + dkw
                piece = band[dkh:dkh + RT, dkw:dkw + OWp, :]       # (RT, OWp, Cs)
                pm = piece.reshape(PT, piece.shape[-1])            # layout-free (OWp % 8 == 0)
                contrib = jnp.dot(pm, w_ref[t],
                                  preferred_element_type=jnp.float32)
                acc = contrib if acc is None else acc + contrib    # (PT, Cout) f32

        a = ab_ref[0, 0:1, :]                         # (1, Cout)
        b = ab_ref[0, 1:2, :]
        y = a * acc + b                               # bias + BN(eval) + FiLM folded
        y = jnp.maximum(y, 0.2 * y)                   # LeakyReLU(0.2)
        o_ref[0, 0] = jnp.transpose(y).astype(o_ref.dtype)   # (Cout, PT), NCHW-flat

    return kernel


# ------------------------------ JAX wrapper -------------------------------- #
def encoder_block_pallas(x_nchw, z, params, *, stride, padding,
                         matmul_dtype=jnp.bfloat16, out_dtype=jnp.float32,
                         target_pixels_per_tile=4096):
    """x_nchw: (N, Cin, H, W) float32;  z: (N, Dz) float32."""
    w = params["conv_w"]                       # (Cout, Cin, KH, KW), OIHW
    cb = params["conv_b"]                      # (Cout,)
    Cout, Cin_w, KH, KW = w.shape
    N, Cin, H, W = x_nchw.shape
    assert Cin == Cin_w
    s, p = int(stride), int(padding)

    OH = (H + 2 * p - KH) // s + 1
    OW = (W + 2 * p - KW) // s + 1
    KB = _cdiv(KH, s)                          # vertical taps after space-to-depth
    KBW = _cdiv(KW, s)                         # horizontal taps
    T = KB * KBW
    Cs = s * s * Cin                           # space-to-depth channels
    OWp = _round_up(OW, 8)                     # cols padded so in-kernel reshape is free
    Wsp = OWp + KBW - 1                        # s2d columns per band

    mdt = jnp.dtype(matmul_dtype).itemsize
    odt = jnp.dtype(out_dtype).itemsize

    # ---- budget-driven row tiling (v7x: 64 MiB VMEM, v5e/v6e: 128 MiB) ----
    cap = _vmem_capacity_bytes()
    budget = int(cap * 0.6)
    lane_pad = lambda c: _round_up(max(int(c), 1), 128)
    band_row_bytes = Wsp * lane_pad(Cs) * mdt
    weight_vmem = T * _round_up(Cs, 8) * lane_pad(Cout) * mdt

    def footprint(rt):
        re = _smallest_divisor_at_least(rt, max(KB - 1, 1))
        pt = rt * OWp
        band = (2 * rt + 2 * re + 3 * (rt + KB)) * band_row_bytes
        outb = 2 * _round_up(Cout, 8) * _round_up(pt, 128) * odt
        accb = 2 * pt * lane_pad(Cout) * 4
        return band + weight_vmem + outb + accb + (2 << 20)

    rt = min(OH, max(1, target_pixels_per_tile // OWp))
    while rt > max(KB - 1, 1) and footprint(rt) > budget:
        rt -= 1
    rt = max(rt, KB - 1, 1)
    n_tiles = _cdiv(OH, rt)
    RT = max(_cdiv(OH, n_tiles), KB - 1, 1)    # balanced row tiles
    RE = _smallest_divisor_at_least(RT, max(KB - 1, 1))   # halo rows (RE | RT)
    OHp = n_tiles * RT
    PT = RT * OWp

    # ---- space-to-depth input (cheap XLA rearrangement, no im2col) ----
    xs_h = OHp + RE                            # s2d rows to allocate (incl. halo)
    xs_w = Wsp
    tgt_h, tgt_w = xs_h * s, xs_w * s
    x_nhwc = jnp.transpose(x_nchw, (0, 2, 3, 1))
    xp = jnp.pad(x_nhwc, ((0, 0), (p, p), (p, p), (0, 0)))
    ph, pw = xp.shape[1], xp.shape[2]
    if tgt_h > ph:
        xp = jnp.pad(xp, ((0, 0), (0, tgt_h - ph), (0, 0), (0, 0)))
    elif tgt_h < ph:
        xp = xp[:, :tgt_h]
    if tgt_w > pw:
        xp = jnp.pad(xp, ((0, 0), (0, 0), (0, tgt_w - pw), (0, 0)))
    elif tgt_w < pw:
        xp = xp[:, :, :tgt_w]
    xs = xp.reshape(N, xs_h, s, xs_w, s, Cin)
    xs = xs.transpose(0, 1, 3, 2, 4, 5).reshape(N, xs_h, xs_w, Cs)
    xs = xs.astype(matmul_dtype)

    # ---- per-tap weight matrices matching the s2d channel order ----
    w_hwio = jnp.transpose(w, (2, 3, 1, 0))                      # (KH, KW, Cin, Cout)
    w_hwio = jnp.pad(w_hwio, ((0, KB * s - KH), (0, KBW * s - KW), (0, 0), (0, 0)))
    w_taps = w_hwio.reshape(KB, s, KBW, s, Cin, Cout)
    w_taps = w_taps.transpose(0, 2, 1, 3, 4, 5).reshape(T, Cs, Cout)
    w_taps = w_taps.astype(matmul_dtype)

    # ---- fold conv bias + BatchNorm(eval) + FiLM into per-(batch,channel) A,B ----
    eps = 1e-5
    bn_scale = params["bn_gamma"] / jnp.sqrt(params["bn_var"] + eps)   # (Cout,)
    bn_shift = params["bn_beta"] - bn_scale * params["bn_mean"]
    gamma = z @ params["film_wg"] + params["film_bg"]                  # (N, Cout)
    beta = z @ params["film_wb"] + params["film_bb"]
    A = (gamma * bn_scale[None, :]).astype(jnp.float32)
    B = (gamma * (bn_scale * cb + bn_shift)[None, :] + beta).astype(jnp.float32)
    ab = jnp.stack([A, B], axis=1)                                     # (N, 2, Cout)

    vmem_limit = int(min(cap * 0.85, 110 << 20))

    kernel = _make_kernel(KB, KBW, RT, OWp)
    out = pl.pallas_call(
        kernel,
        out_shape=jax.ShapeDtypeStruct((N, n_tiles, Cout, PT), out_dtype),
        grid_spec=pltpu.PrefetchScalarGridSpec(
            num_scalar_prefetch=0,
            grid=(N, n_tiles),
            in_specs=[
                # main band: RT s2d rows of this row tile
                pl.BlockSpec((1, RT, xs_w, Cs), lambda b, t: (b, t, 0, 0)),
                # vertical halo: first KB-1 rows of the next tile (RE | RT)
                pl.BlockSpec((1, RE, xs_w, Cs),
                             lambda b, t: (b, (t + 1) * (RT // RE), 0, 0)),
                # per-tap weights: grid-invariant, resident, single-buffered
                pl.BlockSpec((T, Cs, Cout), lambda b, t: (0, 0, 0),
                             pipeline_mode=pl.Buffered(1)),
                # fused scale/shift (A;B) per batch, single-buffered
                pl.BlockSpec((1, 2, Cout), lambda b, t: (b, 0, 0),
                             pipeline_mode=pl.Buffered(1)),
            ],
            out_specs=pl.BlockSpec((1, 1, Cout, PT), lambda b, t: (b, t, 0, 0)),
        ),
        compiler_params=pltpu.CompilerParams(
            dimension_semantics=("parallel", "parallel"),
            vmem_limit_bytes=vmem_limit),
    )(xs, xs, w_taps, ab)

    # (N, tiles, Cout, RT*OWp) -> NCHW, dropping row/col padding (small, unpadded in C)
    out = out.reshape(N, n_tiles, Cout, RT, OWp)
    out = out.transpose(0, 2, 1, 3, 4).reshape(N, Cout, OHp, OWp)
    return out[:, :, :OH, :OW]


# ------------------------------ reference ---------------------------------- #
def encoder_block_reference(x_nchw, z, params, *, stride, padding):
    w = params["conv_w"]
    y = lax.conv_general_dilated(
        x_nchw, w, window_strides=(stride, stride),
        padding=[(padding, padding), (padding, padding)],
        dimension_numbers=("NCHW", "OIHW", "NCHW"))
    y = y + params["conv_b"][None, :, None, None]
    eps = 1e-5
    scale = params["bn_gamma"] / jnp.sqrt(params["bn_var"] + eps)
    shift = params["bn_beta"] - scale * params["bn_mean"]
    y = y * scale[None, :, None, None] + shift[None, :, None, None]
    gamma = z @ params["film_wg"] + params["film_bg"]     # (N, Cout)
    beta = z @ params["film_wb"] + params["film_bb"]
    y = gamma[:, :, None, None] * y + beta[:, :, None, None]
    return jnp.where(y > 0, y, 0.2 * y)


# --------------------------------- main ------------------------------------ #
if __name__ == "__main__":
    # EncoderBlock(in_channels=4, out_channels=8, dropout=0.0, batchnorm=True,
    #              bn_momentum=0.1, activation='leaky_relu', filter_size=5,
    #              stride=2, padding=2, control_depth=6, film_type='simple')
    N, Cin, H, W = 2, 4, 16, 16
    Cout, KH, KW = 8, 5, 5
    stride, padding = 2, 2
    Dz = 6

    key = jax.random.PRNGKey(0)
    ks = jax.random.split(key, 12)
    x = jax.random.normal(ks[0], (N, Cin, H, W), jnp.float32)
    z = jax.random.normal(ks[1], (N, Dz), jnp.float32)

    params = {
        "conv_w": jax.random.normal(ks[2], (Cout, Cin, KH, KW), jnp.float32) * 0.1,
        "conv_b": jax.random.normal(ks[3], (Cout,), jnp.float32) * 0.1,
        "bn_gamma": 1.0 + 0.1 * jax.random.normal(ks[4], (Cout,), jnp.float32),
        "bn_beta": 0.1 * jax.random.normal(ks[5], (Cout,), jnp.float32),
        "bn_mean": 0.1 * jax.random.normal(ks[6], (Cout,), jnp.float32),
        "bn_var": 0.5 + jnp.abs(jax.random.normal(ks[7], (Cout,), jnp.float32)),
        "film_wg": jax.random.normal(ks[8], (Dz, Cout), jnp.float32) * 0.1,
        "film_bg": 1.0 + 0.1 * jax.random.normal(ks[9], (Cout,), jnp.float32),
        "film_wb": jax.random.normal(ks[10], (Dz, Cout), jnp.float32) * 0.1,
        "film_bb": 0.1 * jax.random.normal(ks[11], (Cout,), jnp.float32),
    }

    ref = encoder_block_reference(x, z, params, stride=stride, padding=padding)
    ref = jax.block_until_ready(ref)

    # float32 MXU operands: tight check against the XLA reference
    out_f32 = encoder_block_pallas(x, z, params, stride=stride, padding=padding,
                                   matmul_dtype=jnp.float32)
    out_f32 = jax.block_until_ready(out_f32)
    np.testing.assert_allclose(np.asarray(out_f32), np.asarray(ref),
                               rtol=2e-3, atol=2e-3)

    # bfloat16 MXU operands, f32 output (default fast path; f32 accumulation)
    out_bf16 = encoder_block_pallas(x, z, params, stride=stride, padding=padding)
    out_bf16 = jax.block_until_ready(out_bf16)
    np.testing.assert_allclose(np.asarray(out_bf16), np.asarray(ref),
                               rtol=5e-2, atol=5e-2)

    # bfloat16 output writeback (halves output HBM traffic)
    out_bf16o = encoder_block_pallas(x, z, params, stride=stride, padding=padding,
                                     out_dtype=jnp.bfloat16)
    out_bf16o = jax.block_until_ready(out_bf16o)
    np.testing.assert_allclose(np.asarray(out_bf16o.astype(jnp.float32)),
                               np.asarray(ref), rtol=6e-2, atol=6e-2)

    print("KERNEL_OK")
</pallas_src>

<mosaic_0001>
module attributes {stable_mosaic.version = 11 : i64} {
  func.func @kernel(%arg0: i32, %arg1: i32, %arg2: memref<1x8x10x16xf32, #tpu.memory_space<vmem>>, %arg3: memref<1x2x10x16xf32, #tpu.memory_space<vmem>>, %arg4: memref<9x16x8xf32, #tpu.memory_space<vmem>>, %arg5: memref<1x2x8xf32, #tpu.memory_space<vmem>>, %arg6: memref<1x1x8x64xf32, #tpu.memory_space<vmem>>) attributes {dimension_semantics = [#tpu.dimension_semantics<parallel>, #tpu.dimension_semantics<parallel>], iteration_bounds = array<i64: 2, 1>, scalar_prefetch = 0 : i64, scratch_operands = 0 : i64, tpu.core_type = #tpu.core_type<tc>, window_params = [{transform_indices = @transform_0, window_bounds = array<i64: 1, 8, 10, 16>}, {transform_indices = @transform_1, window_bounds = array<i64: 1, 2, 10, 16>}, {pipeline_mode = #tpu.pipeline_mode<synchronous>, transform_indices = @transform_2, window_bounds = array<i64: 9, 16, 8>}, {pipeline_mode = #tpu.pipeline_mode<synchronous>, transform_indices = @transform_3, window_bounds = array<i64: 1, 2, 8>}, {transform_indices = @transform_4, window_bounds = array<i64: 1, 1, 8, 64>}]} {
    %c0 = arith.constant 0 : index
    %c0_0 = arith.constant 0 : index
    %c0_1 = arith.constant 0 : index
    %c0_2 = arith.constant 0 : index
    %0 = vector.load %arg2[%c0, %c0_0, %c0_1, %c0_2] : memref<1x8x10x16xf32, #tpu.memory_space<vmem>>, vector<1x8x10x16xf32>
    %1 = vector.shape_cast %0 : vector<1x8x10x16xf32> to vector<8x10x16xf32>
    %c0_3 = arith.constant 0 : index
    %c0_4 = arith.constant 0 : index
    %c0_5 = arith.constant 0 : index
    %c0_6 = arith.constant 0 : index
    %2 = vector.load %arg3[%c0_3, %c0_4, %c0_5, %c0_6] : memref<1x2x10x16xf32, #tpu.memory_space<vmem>>, vector<1x2x10x16xf32>
    %3 = vector.shape_cast %2 : vector<1x2x10x16xf32> to vector<2x10x16xf32>
    %4 = tpu.concatenate %1, %3 in 0 : vector<8x10x16xf32>, vector<2x10x16xf32> -> vector<10x10x16xf32>
    %5 = vector.extract_strided_slice %4 {offsets = [0, 0, 0], sizes = [8, 8, 16], strides = [1, 1, 1]} : vector<10x10x16xf32> to vector<8x8x16xf32>
    %6 = vector.shape_cast %5 : vector<8x8x16xf32> to vector<64x16xf32>
    %c0_7 = arith.constant 0 : index
    %c0_8 = arith.constant 0 : index
    %c0_9 = arith.constant 0 : index
    %7 = vector.load %arg4[%c0_7, %c0_8, %c0_9] : memref<9x16x8xf32, #tpu.memory_space<vmem>>, vector<1x16x8xf32>
    %8 = vector.shape_cast %7 : vector<1x16x8xf32> to vector<16x8xf32>
    %cst = arith.constant dense<0.000000e+00> : vector<64x8xf32>
    %9 = tpu.matmul %6, %8, %cst {dimension_numbers = #tpu.dot_dimension_numbers<[1], [0], [0], [1], [0, 0, 1, 1], [], []>} : vector<64x16xf32>, vector<16x8xf32>, vector<64x8xf32> -> vector<64x8xf32>
    %10 = vector.extract_strided_slice %4 {offsets = [0, 1, 0], sizes = [8, 8, 16], strides = [1, 1, 1]} : vector<10x10x16xf32> to vector<8x8x16xf32>
    %11 = vector.shape_cast %10 : vector<8x8x16xf32> to vector<64x16xf32>
    %c1 = arith.constant 1 : index
    %c0_10 = arith.constant 0 : index
    %c0_11 = arith.constant 0 : index
    %12 = vector.load %arg4[%c1, %c0_10, %c0_11] : memref<9x16x8xf32, #tpu.memory_space<vmem>>, vector<1x16x8xf32>
    %13 = vector.shape_cast %12 : vector<1x16x8xf32> to vector<16x8xf32>
    %cst_12 = arith.constant dense<0.000000e+00> : vector<64x8xf32>
    %14 = tpu.matmul %11, %13, %cst_12 {dimension_numbers = #tpu.dot_dimension_numbers<[1], [0], [0], [1], [0, 0, 1, 1], [], []>} : vector<64x16xf32>, vector<16x8xf32>, vector<64x8xf32> -> vector<64x8xf32>
    %15 = arith.addf %9, %14 : vector<64x8xf32>
    %16 = vector.extract_strided_slice %4 {offsets = [0, 2, 0], sizes = [8, 8, 16], strides = [1, 1, 1]} : vector<10x10x16xf32> to vector<8x8x16xf32>
    %17 = vector.shape_cast %16 : vector<8x8x16xf32> to vector<64x16xf32>
    %c2 = arith.constant 2 : index
    %c0_13 = arith.constant 0 : index
    %c0_14 = arith.constant 0 : index
    %18 = vector.load %arg4[%c2, %c0_13, %c0_14] : memref<9x16x8xf32, #tpu.memory_space<vmem>>, vector<1x16x8xf32>
    %19 = vector.shape_cast %18 : vector<1x16x8xf32> to vector<16x8xf32>
    %cst_15 = arith.constant dense<0.000000e+00> : vector<64x8xf32>
    %20 = tpu.matmul %17, %19, %cst_15 {dimension_numbers = #tpu.dot_dimension_numbers<[1], [0], [0], [1], [0, 0, 1, 1], [], []>} : vector<64x16xf32>, vector<16x8xf32>, vector<64x8xf32> -> vector<64x8xf32>
    %21 = arith.addf %15, %20 : vector<64x8xf32>
    %22 = vector.extract_strided_slice %4 {offsets = [1, 0, 0], sizes = [8, 8, 16], strides = [1, 1, 1]} : vector<10x10x16xf32> to vector<8x8x16xf32>
    %23 = vector.shape_cast %22 : vector<8x8x16xf32> to vector<64x16xf32>
    %c3 = arith.constant 3 : index
    %c0_16 = arith.constant 0 : index
    %c0_17 = arith.constant 0 : index
    %24 = vector.load %arg4[%c3, %c0_16, %c0_17] : memref<9x16x8xf32, #tpu.memory_space<vmem>>, vector<1x16x8xf32>
    %25 = vector.shape_cast %24 : vector<1x16x8xf32> to vector<16x8xf32>
    %cst_18 = arith.constant dense<0.000000e+00> : vector<64x8xf32>
    %26 = tpu.matmul %23, %25, %cst_18 {dimension_numbers = #tpu.dot_dimension_numbers<[1], [0], [0], [1], [0, 0, 1, 1], [], []>} : vector<64x16xf32>, vector<16x8xf32>, vector<64x8xf32> -> vector<64x8xf32>
    %27 = arith.addf %21, %26 : vector<64x8xf32>
    %28 = vector.extract_strided_slice %4 {offsets = [1, 1, 0], sizes = [8, 8, 16], strides = [1, 1, 1]} : vector<10x10x16xf32> to vector<8x8x16xf32>
    %29 = vector.shape_cast %28 : vector<8x8x16xf32> to vector<64x16xf32>
    %c4 = arith.constant 4 : index
    %c0_19 = arith.constant 0 : index
    %c0_20 = arith.constant 0 : index
    %30 = vector.load %arg4[%c4, %c0_19, %c0_20] : memref<9x16x8xf32, #tpu.memory_space<vmem>>, vector<1x16x8xf32>
    %31 = vector.shape_cast %30 : vector<1x16x8xf32> to vector<16x8xf32>
    %cst_21 = arith.constant dense<0.000000e+00> : vector<64x8xf32>
    %32 = tpu.matmul %29, %31, %cst_21 {dimension_numbers = #tpu.dot_dimension_numbers<[1], [0], [0], [1], [0, 0, 1, 1], [], []>} : vector<64x16xf32>, vector<16x8xf32>, vector<64x8xf32> -> vector<64x8xf32>
    %33 = arith.addf %27, %32 : vector<64x8xf32>
    %34 = vector.extract_strided_slice %4 {offsets = [1, 2, 0], sizes = [8, 8, 16], strides = [1, 1, 1]} : vector<10x10x16xf32> to vector<8x8x16xf32>
    %35 = vector.shape_cast %34 : vector<8x8x16xf32> to vector<64x16xf32>
    %c5 = arith.constant 5 : index
    %c0_22 = arith.constant 0 : index
    %c0_23 = arith.constant 0 : index
    %36 = vector.load %arg4[%c5, %c0_22, %c0_23] : memref<9x16x8xf32, #tpu.memory_space<vmem>>, vector<1x16x8xf32>
    %37 = vector.shape_cast %36 : vector<1x16x8xf32> to vector<16x8xf32>
    %cst_24 = arith.constant dense<0.000000e+00> : vector<64x8xf32>
    %38 = tpu.matmul %35, %37, %cst_24 {dimension_numbers = #tpu.dot_dimension_numbers<[1], [0], [0], [1], [0, 0, 1, 1], [], []>} : vector<64x16xf32>, vector<16x8xf32>, vector<64x8xf32> -> vector<64x8xf32>
    %39 = arith.addf %33, %38 : vector<64x8xf32>
    %40 = vector.extract_strided_slice %4 {offsets = [2, 0, 0], sizes = [8, 8, 16], strides = [1, 1, 1]} : vector<10x10x16xf32> to vector<8x8x16xf32>
    %41 = vector.shape_cast %40 : vector<8x8x16xf32> to vector<64x16xf32>
    %c6 = arith.constant 6 : index
    %c0_25 = arith.constant 0 : index
    %c0_26 = arith.constant 0 : index
    %42 = vector.load %arg4[%c6, %c0_25, %c0_26] : memref<9x16x8xf32, #tpu.memory_space<vmem>>, vector<1x16x8xf32>
    %43 = vector.shape_cast %42 : vector<1x16x8xf32> to vector<16x8xf32>
    %cst_27 = arith.constant dense<0.000000e+00> : vector<64x8xf32>
    %44 = tpu.matmul %41, %43, %cst_27 {dimension_numbers = #tpu.dot_dimension_numbers<[1], [0], [0], [1], [0, 0, 1, 1], [], []>} : vector<64x16xf32>, vector<16x8xf32>, vector<64x8xf32> -> vector<64x8xf32>
    %45 = arith.addf %39, %44 : vector<64x8xf32>
    %46 = vector.extract_strided_slice %4 {offsets = [2, 1, 0], sizes = [8, 8, 16], strides = [1, 1, 1]} : vector<10x10x16xf32> to vector<8x8x16xf32>
    %47 = vector.shape_cast %46 : vector<8x8x16xf32> to vector<64x16xf32>
    %c7 = arith.constant 7 : index
    %c0_28 = arith.constant 0 : index
    %c0_29 = arith.constant 0 : index
    %48 = vector.load %arg4[%c7, %c0_28, %c0_29] : memref<9x16x8xf32, #tpu.memory_space<vmem>>, vector<1x16x8xf32>
    %49 = vector.shape_cast %48 : vector<1x16x8xf32> to vector<16x8xf32>
    %cst_30 = arith.constant dense<0.000000e+00> : vector<64x8xf32>
    %50 = tpu.matmul %47, %49, %cst_30 {dimension_numbers = #tpu.dot_dimension_numbers<[1], [0], [0], [1], [0, 0, 1, 1], [], []>} : vector<64x16xf32>, vector<16x8xf32>, vector<64x8xf32> -> vector<64x8xf32>
    %51 = arith.addf %45, %50 : vector<64x8xf32>
    %52 = vector.extract_strided_slice %4 {offsets = [2, 2, 0], sizes = [8, 8, 16], strides = [1, 1, 1]} : vector<10x10x16xf32> to vector<8x8x16xf32>
    %53 = vector.shape_cast %52 : vector<8x8x16xf32> to vector<64x16xf32>
    %c8 = arith.constant 8 : index
    %c0_31 = arith.constant 0 : index
    %c0_32 = arith.constant 0 : index
    %54 = vector.load %arg4[%c8, %c0_31, %c0_32] : memref<9x16x8xf32, #tpu.memory_space<vmem>>, vector<1x16x8xf32>
    %55 = vector.shape_cast %54 : vector<1x16x8xf32> to vector<16x8xf32>
    %cst_33 = arith.constant dense<0.000000e+00> : vector<64x8xf32>
    %56 = tpu.matmul %53, %55, %cst_33 {dimension_numbers = #tpu.dot_dimension_numbers<[1], [0], [0], [1], [0, 0, 1, 1], [], []>} : vector<64x16xf32>, vector<16x8xf32>, vector<64x8xf32> -> vector<64x8xf32>
    %57 = arith.addf %51, %56 : vector<64x8xf32>
    %c0_34 = arith.constant 0 : index
    %c0_35 = arith.constant 0 : index
    %c0_36 = arith.constant 0 : index
    %58 = vector.load %arg5[%c0_34, %c0_35, %c0_36] : memref<1x2x8xf32, #tpu.memory_space<vmem>>, vector<1x1x8xf32>
    %59 = vector.shape_cast %58 : vector<1x1x8xf32> to vector<1x8xf32>
    %c0_37 = arith.constant 0 : index
    %c1_38 = arith.constant 1 : index
    %c0_39 = arith.constant 0 : index
    %60 = vector.load %arg5[%c0_37, %c1_38, %c0_39] : memref<1x2x8xf32, #tpu.memory_space<vmem>>, vector<1x1x8xf32>
    %61 = vector.shape_cast %60 : vector<1x1x8xf32> to vector<1x8xf32>
    %62 = vector.broadcast %59 : vector<1x8xf32> to vector<64x8xf32>
    %63 = arith.mulf %62, %57 : vector<64x8xf32>
    %64 = vector.broadcast %61 : vector<1x8xf32> to vector<64x8xf32>
    %65 = arith.addf %63, %64 : vector<64x8xf32>
    %cst_40 = arith.constant 2.000000e-01 : f32
    %66 = vector.broadcast %cst_40 : f32 to vector<64x8xf32>
    %67 = arith.mulf %66, %65 : vector<64x8xf32>
    %68 = arith.maximumf %65, %67 : vector<64x8xf32>
    %69 = tpu.transpose %68, [1, 0] : vector<64x8xf32> -> vector<8x64xf32>
    %c0_41 = arith.constant 0 : index
    %c0_42 = arith.constant 0 : index
    %c0_43 = arith.constant 0 : index
    %c0_44 = arith.constant 0 : index
    %70 = vector.load %arg6[%c0_41, %c0_42, %c0_43, %c0_44] : memref<1x1x8x64xf32, #tpu.memory_space<vmem>>, vector<1x1x8x64xf32>
    %71 = vector.shape_cast %70 : vector<1x1x8x64xf32> to vector<8x64xf32>
    %72 = vector.shape_cast %69 : vector<8x64xf32> to vector<1x1x8x64xf32>
    tpu.vector_store %arg6[%c0_41, %c0_42, %c0_43, %c0_44], %72 {strides = array<i32>} : memref<1x1x8x64xf32, #tpu.memory_space<vmem>>, vector<1x1x8x64xf32>,
    return
  }
  func.func @transform_0(%arg0: i32, %arg1: i32) -> (i32, i32, i32, i32) {
    %c0_i32 = arith.constant 0 : i32
    %c0_i32_0 = arith.constant 0 : i32
    %c0_i32_1 = arith.constant 0 : i32
    return %arg0, %arg1, %c0_i32, %c0_i32_0 : i32, i32, i32, i32
  }
  func.func @transform_1(%arg0: i32, %arg1: i32) -> (i32, i32, i32, i32) {
    %c1_i32 = arith.constant 1 : i32
    %0 = arith.addi %arg1, %c1_i32 : i32
    %c4_i32 = arith.constant 4 : i32
    %1 = arith.muli %0, %c4_i32 : i32
    %c0_i32 = arith.constant 0 : i32
    %c0_i32_0 = arith.constant 0 : i32
    %c0_i32_1 = arith.constant 0 : i32
    return %arg0, %1, %c0_i32, %c0_i32_0 : i32, i32, i32, i32
  }
  func.func @transform_2(%arg0: i32, %arg1: i32) -> (i32, i32, i32) {
    %c0_i32 = arith.constant 0 : i32
    %c0_i32_0 = arith.constant 0 : i32
    %c0_i32_1 = arith.constant 0 : i32
    %c0_i32_2 = arith.constant 0 : i32
    return %c0_i32, %c0_i32_0, %c0_i32_1 : i32, i32, i32
  }
  func.func @transform_3(%arg0: i32, %arg1: i32) -> (i32, i32, i32) {
    %c0_i32 = arith.constant 0 : i32
    %c0_i32_0 = arith.constant 0 : i32
    %c0_i32_1 = arith.constant 0 : i32
    return %arg0, %c0_i32, %c0_i32_0 : i32, i32, i32
  }
  func.func @transform_4(%arg0: i32, %arg1: i32) -> (i32, i32, i32, i32) {
    %c0_i32 = arith.constant 0 : i32
    %c0_i32_0 = arith.constant 0 : i32
    %c0_i32_1 = arith.constant 0 : i32
    return %arg0, %arg1, %c0_i32, %c0_i32_0 : i32, i32, i32, i32
  }
}

</mosaic_0001>

<llo_original>
// kernel: tpu_custom_call.1
$region0: #{tpu_custom_call.1}
  #allocation0 [shape = 'u32[]', space=smem, size = 0x4, offset = 0x4, fixed_abs, tag = 'smem constant byte address 0x4 - core index']
  #allocation1 [shape = 'u32[144,128]{1,0:T(1,128)}', space=vmem, size = 0x12000, scoped, tag = 'internal scratch']
  %s0 = inlined_call_operand.vmem [shape: f32[2,10,10,16], index: 0, kind: input, shape index: {}]
  %s1 = inlined_call_operand.vmem [shape: f32[2,10,10,16], index: 1, kind: input, shape index: {}]
  %s2 = inlined_call_operand.vmem [shape: f32[9,16,8], index: 2, kind: input, shape index: {}]
  %s3 = inlined_call_operand.vmem [shape: f32[2,2,8], index: 3, kind: input, shape index: {}]
  %s4 = inlined_call_operand.hbm [shape: f32[2,1,8,64], index: 4, kind: output, shape index: {}]
  %s5 = sld [smem:[#allocation0]]
  $region49: #{tpu_custom_call.1} parent=0
    _
  %s7 = ssub.s32 1, %s5
  %s8 = scalar_select 0, %s7, %s5
  $region1: #{tpu_custom_call.1} parent=0
    #allocation2 [shape = 'u8[8192]{0}', space=vmem, size = 0x2000, scoped, tag = 'output window, operand 0']
    #allocation3 [shape = 's32[2]{0}', space=sflag, size = 0x8, scoped, tag = 'scoped memory for tpu_custom_call.1']
    %9 = vsyncpa [#allocation3], 0
    %s10 = scalar_lea.sflag [#allocation3], 1
    %11 = vsyncpa %s10, 0
    loop: start=0, step=1, limit=4
    $region2: #{tpu_custom_call.1} parent=1 // loop_pre_header
      _
    $region3: #{tpu_custom_call.1} parent=1 // loop_header
      %s13 = sphi 0, %s17
      %p14 = scmp.ge.s32.totalorder %s13, 4
      %s20 = sphi 0, %s32
      %s21 = sphi 0, %s28
      %s22 = sphi 0, %s20
      %s23 = sphi 0, %s21
      %s24 = sphi 0, %s22
      %s25 = sphi 0, %s23
      %s37 = sphi 0, %s39
      %s40 = sphi 0, %s37
      %s41 = sphi 0, %s40
      %s57 = sphi 0, %s41
      %s69 = sphi 0, %s71
      %s72 = sphi 0, %s69
      %s73 = sphi 0, %s72
      %s89 = sphi 0, %s73
      %s93 = sphi 0, %s93
      %s95 = sphi 0, %s93
      %s96 = sphi 0, %s95
      %s110 = sphi 0, %s96
      %s116 = sphi 0, %s118
      %s119 = sphi 0, %s116
      %s120 = sphi 0, %s119
      %s136 = sphi 0, %s120
      %s144 = sphi 0, %s146
      %s147 = sphi 0, %s144
      %s148 = sphi 0, %s147
      %s164 = sphi 0, %s148
    $region4: #{tpu_custom_call.1} parent=1 // loop_header_branch
      %16 = sbr.rel (%p14) target = $region8
    $region5: #{tpu_custom_call.1} parent=1 // loop_body
      %s18 = ssub.s32 %s13, 1
      %s19 = ssub.s32 %s13, 2
      %s26 = sadd.s32 1, %s21
      %p27 = scmp.ge.s32.totalorder %s26, 1
      %s28 = scalar_select %p27, 0, %s26
      %s29 = sadd.s32 1, %s20
      %s30 = scalar_select %p27, %s29, %s20
      %p31 = scmp.ge.s32.totalorder %s30, 2
      %s32 = scalar_select %p31, 0, %s30
      %s33 = ssub.s32 %s20, %s32
      %s34 = ssub.s32 %s21, %s28
      %s35 = sor.u32 %s33, %s34
      %p36 = scmp.eq.s32.totalorder %s35, 0
      %s38 = sadd.s32 %s37, 1
      %s39 = scalar_select %p36, %s37, %s38
      %p42 = pneg %p36
      %p43 = scmp.eq.s32.totalorder %s13, 1
      %p44 = por %p42, %p43
      %p45 = scmp.ne.s32.totalorder %s37, %s40
      %p46 = scmp.eq.s32.totalorder %s13, 0
      %p47 = por %p45, %p46
      %p48 = scmp.ne.s32.totalorder %s37, %s40
      %p49 = scmp.eq.s32.totalorder %s18, 1
      %p50 = por %p48, %p49
      %p51 = scmp.ne.s32.totalorder %s40, %s41
      %p52 = scmp.eq.s32.totalorder %s18, 0
      %p53 = por %p51, %p52
      %p54 = scmp.ne.s32.totalorder %s40, %s41
      %p55 = scmp.eq.s32.totalorder %s19, 1
      %p56 = por %p54, %p55
      %p58 = scmp.ne.s32.totalorder %s41, %s57
      %p59 = scmp.eq.s32.totalorder %s19, 0
      %p60 = por %p58, %p59
      %s61 = sadd.s32 %s21, 1
      %s62 = smul.u32 %s61, 4
      %s63 = sadd.s32 %s28, 1
      %s64 = smul.u32 %s63, 4
      %s65 = ssub.s32 %s20, %s32
      %s66 = ssub.s32 %s62, %s64
      %s67 = sor.u32 %s65, %s66
      %p68 = scmp.eq.s32.totalorder %s67, 0
      %s70 = sadd.s32 %s69, 1
      %s71 = scalar_select %p68, %s69, %s70
      %p74 = pneg %p68
      %p75 = scmp.eq.s32.totalorder %s13, 1
      %p76 = por %p74, %p75
      %p77 = scmp.ne.s32.totalorder %s69, %s72
      %p78 = scmp.eq.s32.totalorder %s13, 0
      %p79 = por %p77, %p78
      %p80 = scmp.ne.s32.totalorder %s69, %s72
      %p81 = scmp.eq.s32.totalorder %s18, 1
      %p82 = por %p80, %p81
      %p83 = scmp.ne.s32.totalorder %s72, %s73
      %p84 = scmp.eq.s32.totalorder %s18, 0
      %p85 = por %p83, %p84
      %p86 = scmp.ne.s32.totalorder %s72, %s73
      %p87 = scmp.eq.s32.totalorder %s19, 1
      %p88 = por %p86, %p87
      %p90 = scmp.ne.s32.totalorder %s73, %s89
      %p91 = scmp.eq.s32.totalorder %s19, 0
      %p92 = por %p90, %p91
      %s94 = sadd.s32 %s93, 1
      %p97 = scmp.eq.s32.totalorder %s13, 1
      %p98 = scmp.ne.s32.totalorder %s93, %s95
      %p99 = scmp.eq.s32.totalorder %s13, 0
      %p100 = por %p98, %p99
      %p101 = scmp.ne.s32.totalorder %s93, %s95
      %p102 = scmp.eq.s32.totalorder %s18, 1
      %p103 = por %p101, %p102
      %p104 = scmp.ne.s32.totalorder %s95, %s96
      %p105 = scmp.eq.s32.totalorder %s18, 0
      %p106 = por %p104, %p105
      %p107 = scmp.ne.s32.totalorder %s95, %s96
      %p108 = scmp.eq.s32.totalorder %s19, 1
      %p109 = por %p107, %p108
      %p111 = scmp.ne.s32.totalorder %s96, %s110
      %p112 = scmp.eq.s32.totalorder %s19, 0
      %p113 = por %p111, %p112
      %s114 = ssub.s32 %s20, %s32
      %p115 = scmp.eq.s32.totalorder %s114, 0
      %s117 = sadd.s32 %s116, 1
      %s118 = scalar_select %p115, %s116, %s117
      %p121 = pneg %p115
      %p122 = scmp.eq.s32.totalorder %s13, 1
      %p123 = por %p121, %p122
      %p124 = scmp.ne.s32.totalorder %s116, %s119
      %p125 = scmp.eq.s32.totalorder %s13, 0
      %p126 = por %p124, %p125
      %p127 = scmp.ne.s32.totalorder %s116, %s119
      %p128 = scmp.eq.s32.totalorder %s18, 1
      %p129 = por %p127, %p128
      %p130 = scmp.ne.s32.totalorder %s119, %s120
      %p131 = scmp.eq.s32.totalorder %s18, 0
      %p132 = por %p130, %p131
      %p133 = scmp.ne.s32.totalorder %s119, %s120
      %p134 = scmp.eq.s32.totalorder %s19, 1
      %p135 = por %p133, %p134
      %p137 = scmp.ne.s32.totalorder %s120, %s136
      %p138 = scmp.eq.s32.totalorder %s19, 0
      %p139 = por %p137, %p138
      %s140 = ssub.s32 %s20, %s32
      %s141 = ssub.s32 %s21, %s28
      %s142 = sor.u32 %s140, %s141
      %p143 = scmp.eq.s32.totalorder %s142, 0
      %s145 = sadd.s32 %s144, 1
      %s146 = scalar_select %p143, %s144, %s145
      %p149 = pneg %p143
      %p150 = scmp.eq.s32.totalorder %s13, 1
      %p151 = por %p149, %p150
      %p152 = scmp.ne.s32.totalorder %s144, %s147
      %p153 = scmp.eq.s32.totalorder %s13, 0
      %p154 = por %p152, %p153
      %p155 = scmp.ne.s32.totalorder %s144, %s147
      %p156 = scmp.eq.s32.totalorder %s18, 1
      %p157 = por %p155, %p156
      %p158 = scmp.ne.s32.totalorder %s147, %s148
      %p159 = scmp.eq.s32.totalorder %s18, 0
      %p160 = por %p158, %p159
      %p161 = scmp.ne.s32.totalorder %s147, %s148
      %p162 = scmp.eq.s32.totalorder %s19, 1
      %p163 = por %p161, %p162
      %p165 = scmp.ne.s32.totalorder %s148, %s164
      %p166 = scmp.eq.s32.totalorder %s19, 0
      %p167 = por %p165, %p166
      %p168 = scmp.le.s32.totalorder 1, %s13
      %p169 = scmp.lt.s32.totalorder %s13, 3
      %p170 = pnand %p168, %p169
      %p171 = pneg %p170
      // Predicated region
      $region9: #{tpu_custom_call.1} parent=5 // pred_check
        _
      $region10: #{tpu_custom_call.1} parent=5 // pred_check_branch
        %173 = sbr.rel (%p170) target = $region12
      $region11: #{tpu_custom_call.1} parent=5 // pred_region
        %s174 = ssub.s32 %s13, 1
        // Predicated region
        $region13: #{tpu_custom_call.1} parent=11 // pred_check
          %p175 = pneg %p106
        $region14: #{tpu_custom_call.1} parent=11 // pred_check_branch
          %177 = sbr.rel (%p175) target = $region16
        $region15: #{tpu_custom_call.1} parent=11 // pred_region
          _
        $region16: #{tpu_custom_call.1} parent=11 // pred_fallthru
          _
        // Predicated region
        $region17: #{tpu_custom_call.1} parent=11 // pred_check
          %p178 = pneg %p132
        $region18: #{tpu_custom_call.1} parent=11 // pred_check_branch
          %180 = sbr.rel (%p178) target = $region20
        $region19: #{tpu_custom_call.1} parent=11 // pred_region
          %p181 = scmp.lt.s32.totalorder %s22, 1
          %s182 = scalar_select %p181, %s22, 1
          %s183 = smul.addr %s182, 2
          %s184 = scalar_lea.vmem %s3, %s183
        $region20: #{tpu_custom_call.1} parent=11 // pred_fallthru
          _
      $region12: #{tpu_custom_call.1} parent=5 // pred_fallthru
        _
      %p185 = scmp.lt.s32.totalorder %s13, 2
      // Predicated region
      $region21: #{tpu_custom_call.1} parent=5 // pred_check
        %p186 = pneg %p185
      $region22: #{tpu_custom_call.1} parent=5 // pred_check_branch
        %188 = sbr.rel (%p186) target = $region24
      $region23: #{tpu_custom_call.1} parent=5 // pred_region
        // Predicated region
        $region25: #{tpu_custom_call.1} parent=23 // pred_check
          %p189 = pneg %p47
        $region26: #{tpu_custom_call.1} parent=23 // pred_check_branch
          %191 = sbr.rel (%p189) target = $region28
        $region27: #{tpu_custom_call.1} parent=23 // pred_region
          %s192 = smul.u32 8, %s21
          %s193 = ssub.s32 10, %s192
          %p194 = scmp.lt.s32.totalorder %s193, 8
          %s195 = scalar_select %p194, %s193, 8
          %s196 = smul.u32 128, %s195
          %s197 = smul.u32 %s196, 2
          %p198 = scmp.lt.s32.totalorder %s20, 1
          %s199 = scalar_select %p198, %s20, 1
          %p200 = scmp.lt.s32.totalorder %s192, 9
          %s201 = scalar_select %p200, %s192, 9
          %s202 = smul.addr %s201, 2
          %s203 = smul.addr %s199, 20
          %s204 = sadd.s32 %s202, %s203
          %s205 = smul.addr %s204, 8
          %s206 = scalar_lea.vmem %s0, %s205
          %s207 = smul.u32 8, %s21
          %s208 = ssub.s32 10, %s207
          %p209 = scmp.lt.s32.totalorder %s208, 8
          %s210 = scalar_select %p209, %s208, 8
          %s211 = smul.u32 128, %s210
          %s212 = smul.u32 %s211, 2
        $region28: #{tpu_custom_call.1} parent=23 // pred_fallthru
          _
        // Predicated region
        $region29: #{tpu_custom_call.1} parent=23 // pred_check
          %p213 = pneg %p79
        $region30: #{tpu_custom_call.1} parent=23 // pred_check_branch
          %215 = sbr.rel (%p213) target = $region32
        $region31: #{tpu_custom_call.1} parent=23 // pred_region
          %s216 = sadd.s32 %s21, 1
          %s217 = smul.u32 %s216, 4
          %s218 = smul.u32 2, %s217
          %p219 = scmp.lt.s32.totalorder %s20, 1
          %s220 = scalar_select %p219, %s20, 1
          %p221 = scmp.lt.s32.totalorder %s218, 9
          %s222 = scalar_select %p221, %s218, 9
          %s223 = smul.addr %s222, 2
          %s224 = smul.addr %s220, 20
          %s225 = sadd.s32 %s223, %s224
          %s226 = smul.addr %s225, 8
          %s227 = scalar_lea.vmem %s1, %s226
          %s228 = sadd.s32 %s21, 1
          %s229 = smul.u32 %s228, 4
          %s230 = smul.u32 2, %s229
        $region32: #{tpu_custom_call.1} parent=23 // pred_fallthru
          _
      $region24: #{tpu_custom_call.1} parent=5 // pred_fallthru
        _
      %p231 = scmp.le.s32.totalorder 1, %s13
      %p232 = scmp.lt.s32.totalorder %s13, 3
      %p233 = pnand %p231, %p232
      %p234 = pneg %p233
      // Predicated region
      $region33: #{tpu_custom_call.1} parent=5 // pred_check
        _
      $region34: #{tpu_custom_call.1} parent=5 // pred_check_branch
        %236 = sbr.rel (%p233) target = $region36
      $region35: #{tpu_custom_call.1} parent=5 // pred_region
        %s237 = ssub.s32 %s13, 1
        %s238 = smul.u32 8, %s23
        %s239 = ssub.s32 10, %s238
        %p240 = scmp.lt.s32.totalorder %s239, 8
        %s241 = scalar_select %p240, %s239, 8
        %s242 = smul.u32 128, %s241
        %s243 = smul.u32 %s242, 2
        %p244 = scmp.lt.s32.totalorder %s22, 1
        %s245 = scalar_select %p244, %s22, 1
        %p246 = scmp.lt.s32.totalorder %s238, 9
        %s247 = scalar_select %p246, %s238, 9
        %s248 = smul.addr %s247, 2
        %s249 = smul.addr %s245, 20
        %s250 = sadd.s32 %s248, %s249
        %s251 = smul.addr %s250, 8
        %s252 = scalar_lea.vmem %s0, %s251
        %p253 = pneg %p53
        %p254 = pneg %p50
        %s255 = sadd.s32 %s23, 1
        %s256 = smul.u32 %s255, 4
        %s257 = smul.u32 2, %s256
        %p258 = scmp.lt.s32.totalorder %s22, 1
        %s259 = scalar_select %p258, %s22, 1
        %p260 = scmp.lt.s32.totalorder %s257, 9
        %s261 = scalar_select %p260, %s257, 9
        %s262 = smul.addr %s261, 2
        %s263 = smul.addr %s259, 20
        %s264 = sadd.s32 %s262, %s263
        %s265 = smul.addr %s264, 8
        %s266 = scalar_lea.vmem %s1, %s265
        %p267 = pneg %p85
        %p268 = pneg %p82
        %p269 = pneg %p106
        %p270 = pneg %p103
        %p271 = scmp.lt.s32.totalorder %s22, 1
        %s272 = scalar_select %p271, %s22, 1
        %s273 = smul.addr %s272, 2
        %s274 = scalar_lea.vmem %s3, %s273
        %p275 = pneg %p132
        %p276 = pneg %p129
        %p277 = pneg %p160
        %p278 = pneg %p157
        %s279 = sand.u32 %s147, 1
        %s280 = scalar_lea.sflag [#allocation3], %s279
        %s281 = sand.u32 %s147, 1
        %s282 = smul.addr %s281, 8
        %s283 = scalar_lea.vmem [#allocation2], %s282
        %s284 = smul.u32 8, %s23
        %s285 = ssub.s32 10, %s284
        %p286 = scmp.lt.s32.totalorder %s285, 8
        %s287 = scalar_select %p286, %s285, 8
        %s288 = smul.u32 128, %s287
        %s289 = smul.u32 %s288, 2
        %p290 = scmp.lt.s32.totalorder %s22, 1
        %s291 = scalar_select %p290, %s22, 1
        %p292 = scmp.lt.s32.totalorder %s284, 9
        %s293 = scalar_select %p292, %s284, 9
        %s294 = smul.addr %s293, 2
        %s295 = smul.addr %s291, 20
        %s296 = sadd.s32 %s294, %s295
        %s297 = smul.addr %s296, 8
        %s298 = scalar_lea.vmem %s0, %s297
        %s299 = smul.u32 8, %s23
        %s300 = ssub.s32 10, %s299
        %p301 = scmp.lt.s32.totalorder %s300, 8
        %s302 = scalar_select %p301, %s300, 8
        %s303 = smul.u32 128, %s302
        %s304 = smul.u32 %s303, 2
        %s305 = sadd.s32 %s23, 1
        %s306 = smul.u32 %s305, 4
        %s307 = smul.u32 2, %s306
        %p308 = scmp.lt.s32.totalorder %s22, 1
        %s309 = scalar_select %p308, %s22, 1
        %p310 = scmp.lt.s32.totalorder %s307, 9
        %s311 = scalar_select %p310, %s307, 9
        %s312 = smul.addr %s311, 2
        %s313 = smul.addr %s309, 20
        %s314 = sadd.s32 %s312, %s313
        %s315 = smul.addr %s314, 8
        %s316 = scalar_lea.vmem %s1, %s315
        %s317 = sadd.s32 %s23, 1
        %s318 = smul.u32 %s317, 4
        %s319 = smul.u32 2, %s318
        %p320 = scmp.lt.s32.totalorder %s22, 1
        %s321 = scalar_select %p320, %s22, 1
        %s322 = smul.addr %s321, 2
        %s323 = scalar_lea.vmem %s3, %s322
        %v324 = vld [vmem:[%s298] sm:$0xff]
        %v325 = vld [vmem:[%s298 + $0x8] sm:$0x3]
        %v326 = vld [vmem:[%s298 + $0x10] sm:$0xff]
        %v327 = vld [vmem:[%s298 + $0x18] sm:$0x3]
        %v328 = vld [vmem:[%s298 + $0x20] sm:$0xff]
        %v329 = vld [vmem:[%s298 + $0x28] sm:$0x3]
        %v330 = vld [vmem:[%s298 + $0x30] sm:$0xff]
        %v331 = vld [vmem:[%s298 + $0x38] sm:$0x3]
        %v332 = vld [vmem:[%s298 + $0x40] sm:$0xff]
        %v333 = vld [vmem:[%s298 + $0x48] sm:$0x3]
        %v334 = vld [vmem:[%s298 + $0x50] sm:$0xff]
        %v335 = vld [vmem:[%s298 + $0x58] sm:$0x3]
        %v336 = vld [vmem:[%s298 + $0x60] sm:$0xff]
        %v337 = vld [vmem:[%s298 + $0x68] sm:$0x3]
        %v338 = vld [vmem:[%s298 + $0x70] sm:$0xff]
        %v339 = vld [vmem:[%s298 + $0x78] sm:$0x3]
        %v340 = vld [vmem:[%s316] sm:$0xff]
        %v341 = vld [vmem:[%s316 + $0x8] sm:$0x3]
        %v342 = vld [vmem:[%s316 + $0x10] sm:$0xff]
        %v343 = vld [vmem:[%s316 + $0x18] sm:$0x3]
        %v344 = vld [vmem:[%s2] sm:$0xff]
        %v345 = vld [vmem:[%s2 + $0x8] sm:$0xff]
        %vm362 = vcmask 1046528
        %v363 = vrot.slane %v324, 1
        %v364 = vrot.slane %v325, 1
        %v365 = vsel %vm362, %v363, %v364
        %v366 = vrot.slane %v326, 1
        %v367 = vrot.slane %v327, 1
        %v368 = vsel %vm362, %v366, %v367
        %v369 = vrot.slane %v328, 1
        %v370 = vrot.slane %v329, 1
        %v371 = vsel %vm362, %v369, %v370
        %v372 = vrot.slane %v330, 1
        %v373 = vrot.slane %v331, 1
        %v374 = vsel %vm362, %v372, %v373
        %v375 = vrot.slane %v332, 1
        %v376 = vrot.slane %v333, 1
        %v377 = vsel %vm362, %v375, %v376
        %v378 = vrot.slane %v334, 1
        %v379 = vrot.slane %v335, 1
        %v380 = vsel %vm362, %v378, %v379
        %v381 = vrot.slane %v336, 1
        %v382 = vrot.slane %v337, 1
        %v383 = vsel %vm362, %v381, %v382
        %v384 = vrot.slane %v338, 1
        %v385 = vrot.slane %v339, 1
        %v386 = vsel %vm362, %v384, %v385
        %s387 = scalar_lea.vmem %s2, 16
        %v388 = vld [vmem:[%s387] sm:$0xff]
        %v389 = vld [vmem:[%s387 + $0x8] sm:$0xff]
        %vm390 = vcmask 130048
        %v391 = vsel %vm390, %v365, 0
        %v393 = vsel %vm390, %v368, 0
        %v395 = vsel %vm390, %v371, 0
        %v397 = vsel %vm390, %v374, 0
        %v399 = vsel %vm390, %v377, 0
        %v401 = vsel %vm390, %v380, 0
        %v403 = vsel %vm390, %v383, 0
        %v405 = vsel %vm390, %v386, 0
        %407 = vmatprep.subr.mxu0 0.0
        %408 = vmatpush1.msra.mxu0 %v388
        %409 = vmatprep.subr.mxu0 0.0
        %410 = vmatpush1.msra.mxu0 %v389
        %411 = vmatprep.subr.mxu0 0.0
        %412 = vmatpush1.msra.mxu0 0.0
        %413 = vmatprep.subr.mxu0 0.0
        %414 = vmatpush1.msra.mxu0 0.0
        %415 = vmatprep.subr.mxu0 0.0
        %416 = vmatpush1.msra.mxu0 0.0
        %417 = vmatprep.subr.mxu0 0.0
        %418 = vmatpush1.msra.mxu0 0.0
        %419 = vmatprep.subr.mxu0 0.0
        %420 = vmatpush1.msra.mxu0 0.0
        %421 = vmatprep.subr.mxu0 0.0
        %422 = vmatpush1.msra.mxu0 0.0
        %423 = vmatprep.subr.mxu0 0.0
        %424 = vmatpush1.msra.mxu0 0.0
        %425 = vmatprep.subr.mxu0 0.0
        %426 = vmatpush1.msra.mxu0 0.0
        %427 = vmatprep.subr.mxu0 0.0
        %428 = vmatpush1.msra.mxu0 0.0
        %429 = vmatprep.subr.mxu0 0.0
        %430 = vmatpush1.msra.mxu0 0.0
        %431 = vmatprep.subr.mxu0 0.0
        %432 = vmatpush1.msra.mxu0 0.0
        %433 = vmatprep.subr.mxu0 0.0
        %434 = vmatpush1.msra.mxu0 0.0
        %435 = vmatprep.subr.mxu0 0.0
        %436 = vmatpush1.msra.mxu0 0.0
        %437 = vmatprep.subr.mxu0 0.0
        %438 = vmatpush1.msra.mxu0 0.0
        %439 = vmatprep.subr.mxu0 0.0
        %440 = vmatpush1.msra.mxu0 0.0
        %441 = vmatprep.subr.mxu0 0.0
        %442 = vmatpush1.msra.mxu0 0.0
        %443 = vmatprep.subr.mxu0 0.0
        %444 = vmatpush1.msra.mxu0 0.0
        %445 = vmatprep.subr.mxu0 0.0
        %446 = vmatpush1.msra.mxu0 0.0
        %447 = vmatprep.subr.mxu0 0.0
        %448 = vmatpush1.msra.mxu0 0.0
        %449 = vmatprep.subr.mxu0 0.0
        %450 = vmatpush1.msra.mxu0 0.0
        %451 = vmatprep.subr.mxu0 0.0
        %452 = vmatpush1.msra.mxu0 0.0
        %453 = vmatprep.subr.mxu0 0.0
        %454 = vmatpush1.msra.mxu0 0.0
        %455 = vmatprep.subr.mxu0 0.0
        %456 = vmatpush1.msra.mxu0 0.0
        %457 = vmatprep.subr.mxu0 0.0
        %458 = vmatpush1.msra.mxu0 0.0
        %459 = vmatprep.subr.mxu0 0.0
        %460 = vmatpush1.msra.mxu0 0.0
        %461 = vmatprep.subr.mxu0 0.0
        %462 = vmatpush1.msra.mxu0 0.0
        %463 = vmatprep.subr.mxu0 0.0
        %464 = vmatpush1.msra.mxu0 0.0
        %465 = vmatprep.subr.mxu0 0.0
        %466 = vmatpush1.msra.mxu0 0.0
        %467 = vmatprep.subr.mxu0 0.0
        %468 = vmatpush1.msra.mxu0 0.0
        %469 = vmatprep.subr.mxu0 0.0
        %470 = vmatpush1.msra.mxu0 0.0
        %471 = vmatprep.mubr.f32.mxu0 0.0
        %472 = vmatmul.mubr.f32.gmra.mrb[0].mxu0 %v391
        %v473 = vpop.f32.mrb[0].mxu0
        %v474 = vadd.f32 0.0, %v473
        %v475 = vpop.f32.mrb[0].mxu0
        %476 = vmatprep.mubr.f32.mxu0 0.0
        %477 = vmatmul.mubr.f32.gmra.mrb[0].mxu0 %v393
        %v478 = vpop.f32.mrb[0].mxu0
        %v479 = vadd.f32 0.0, %v478
        %v480 = vpop.f32.mrb[0].mxu0
        %481 = vmatprep.mubr.f32.mxu0 0.0
        %482 = vmatmul.mubr.f32.gmra.mrb[0].mxu0 %v395
        %v483 = vpop.f32.mrb[0].mxu0
        %v484 = vadd.f32 0.0, %v483
        %v485 = vpop.f32.mrb[0].mxu0
        %486 = vmatprep.mubr.f32.mxu0 0.0
        %487 = vmatmul.mubr.f32.gmra.mrb[0].mxu0 %v397
        %v488 = vpop.f32.mrb[0].mxu0
        %v489 = vadd.f32 0.0, %v488
        %v490 = vpop.f32.mrb[0].mxu0
        %491 = vmatprep.mubr.f32.mxu0 0.0
        %492 = vmatmul.mubr.f32.gmra.mrb[0].mxu0 %v399
        %v493 = vpop.f32.mrb[0].mxu0
        %v494 = vadd.f32 0.0, %v493
        %v495 = vpop.f32.mrb[0].mxu0
        %496 = vmatprep.mubr.f32.mxu0 0.0
        %497 = vmatmul.mubr.f32.gmra.mrb[0].mxu0 %v401
        %v498 = vpop.f32.mrb[0].mxu0
        %v499 = vadd.f32 0.0, %v498
        %v500 = vpop.f32.mrb[0].mxu0
        %501 = vmatprep.mubr.f32.mxu0 0.0
        %502 = vmatmul.mubr.f32.gmra.mrb[0].mxu0 %v403
        %v503 = vpop.f32.mrb[0].mxu0
        %v504 = vadd.f32 0.0, %v503
        %v505 = vpop.f32.mrb[0].mxu0
        %506 = vmatprep.mubr.f32.mxu0 0.0
        %507 = vmatmul.mubr.f32.gmra.mrb[0].mxu0 %v405
        %v508 = vpop.f32.mrb[0].mxu0
        %v509 = vadd.f32 0.0, %v508
        %v510 = vpop.f32.mrb[0].mxu0
        %511 = vdwg.mxu0
        %v512 = vsel %vm390, %v324, 0
        %v514 = vsel %vm390, %v326, 0
        %v516 = vsel %vm390, %v328, 0
        %v518 = vsel %vm390, %v330, 0
        %v520 = vsel %vm390, %v332, 0
        %v522 = vsel %vm390, %v334, 0
        %v524 = vsel %vm390, %v336, 0
        %v526 = vsel %vm390, %v338, 0
        %528 = vmatprep.subr.mxu0 0.0
        %529 = vmatpush1.msra.mxu0 %v344
        %530 = vmatprep.subr.mxu0 0.0
        %531 = vmatpush1.msra.mxu0 %v345
        %532 = vmatprep.subr.mxu0 0.0
        %533 = vmatpush1.msra.mxu0 0.0
        %534 = vmatprep.subr.mxu0 0.0
        %535 = vmatpush1.msra.mxu0 0.0
        %536 = vmatprep.subr.mxu0 0.0
        %537 = vmatpush1.msra.mxu0 0.0
        %538 = vmatprep.subr.mxu0 0.0
        %539 = vmatpush1.msra.mxu0 0.0
        %540 = vmatprep.subr.mxu0 0.0
        %541 = vmatpush1.msra.mxu0 0.0
        %542 = vmatprep.subr.mxu0 0.0
        %543 = vmatpush1.msra.mxu0 0.0
        %544 = vmatprep.subr.mxu0 0.0
        %545 = vmatpush1.msra.mxu0 0.0
        %546 = vmatprep.subr.mxu0 0.0
        %547 = vmatpush1.msra.mxu0 0.0
        %548 = vmatprep.subr.mxu0 0.0
        %549 = vmatpush1.msra.mxu0 0.0
        %550 = vmatprep.subr.mxu0 0.0
        %551 = vmatpush1.msra.mxu0 0.0
        %552 = vmatprep.subr.mxu0 0.0
        %553 = vmatpush1.msra.mxu0 0.0
        %554 = vmatprep.subr.mxu0 0.0
        %555 = vmatpush1.msra.mxu0 0.0
        %556 = vmatprep.subr.mxu0 0.0
        %557 = vmatpush1.msra.mxu0 0.0
        %558 = vmatprep.subr.mxu0 0.0
        %559 = vmatpush1.msra.mxu0 0.0
        %560 = vmatprep.subr.mxu0 0.0
        %561 = vmatpush1.msra.mxu0 0.0
        %562 = vmatprep.subr.mxu0 0.0
        %563 = vmatpush1.msra.mxu0 0.0
        %564 = vmatprep.subr.mxu0 0.0
        %565 = vmatpush1.msra.mxu0 0.0
        %566 = vmatprep.subr.mxu0 0.0
        %567 = vmatpush1.msra.mxu0 0.0
        %568 = vmatprep.subr.mxu0 0.0
        %569 = vmatpush1.msra.mxu0 0.0
        %570 = vmatprep.subr.mxu0 0.0
        %571 = vmatpush1.msra.mxu0 0.0
        %572 = vmatprep.subr.mxu0 0.0
        %573 = vmatpush1.msra.mxu0 0.0
        %574 = vmatprep.subr.mxu0 0.0
        %575 = vmatpush1.msra.mxu0 0.0
        %576 = vmatprep.subr.mxu0 0.0
        %577 = vmatpush1.msra.mxu0 0.0
        %578 = vmatprep.subr.mxu0 0.0
        %579 = vmatpush1.msra.mxu0 0.0
        %580 = vmatprep.subr.mxu0 0.0
        %581 = vmatpush1.msra.mxu0 0.0
        %582 = vmatprep.subr.mxu0 0.0
        %583 = vmatpush1.msra.mxu0 0.0
        %584 = vmatprep.subr.mxu0 0.0
        %585 = vmatpush1.msra.mxu0 0.0
        %586 = vmatprep.subr.mxu0 0.0
        %587 = vmatpush1.msra.mxu0 0.0
        %588 = vmatprep.subr.mxu0 0.0
        %589 = vmatpush1.msra.mxu0 0.0
        %590 = vmatprep.subr.mxu0 0.0
        %591 = vmatpush1.msra.mxu0 0.0
        %592 = vmatprep.mubr.f32.mxu0 0.0
        %593 = vmatmul.mubr.f32.gmra.mrb[0].mxu0 %v512
        %v594 = vpop.f32.mrb[0].mxu0
        %v595 = vadd.f32 %v474, %v594
        %v596 = vpop.f32.mrb[0].mxu0
        %597 = vmatprep.mubr.f32.mxu0 0.0
        %598 = vmatmul.mubr.f32.gmra.mrb[0].mxu0 %v514
        %v599 = vpop.f32.mrb[0].mxu0
        %v600 = vadd.f32 %v479, %v599
        %v601 = vpop.f32.mrb[0].mxu0
        %602 = vmatprep.mubr.f32.mxu0 0.0
        %603 = vmatmul.mubr.f32.gmra.mrb[0].mxu0 %v516
        %v604 = vpop.f32.mrb[0].mxu0
        %v605 = vadd.f32 %v484, %v604
        %v606 = vpop.f32.mrb[0].mxu0
        %607 = vmatprep.mubr.f32.mxu0 0.0
        %608 = vmatmul.mubr.f32.gmra.mrb[0].mxu0 %v518
        %v609 = vpop.f32.mrb[0].mxu0
        %v610 = vadd.f32 %v489, %v609
        %v611 = vpop.f32.mrb[0].mxu0
        %612 = vmatprep.mubr.f32.mxu0 0.0
        %613 = vmatmul.mubr.f32.gmra.mrb[0].mxu0 %v520
        %v614 = vpop.f32.mrb[0].mxu0
        %v615 = vadd.f32 %v494, %v614
        %v616 = vpop.f32.mrb[0].mxu0
        %617 = vmatprep.mubr.f32.mxu0 0.0
        %618 = vmatmul.mubr.f32.gmra.mrb[0].mxu0 %v522
        %v619 = vpop.f32.mrb[0].mxu0
        %v620 = vadd.f32 %v499, %v619
        %v621 = vpop.f32.mrb[0].mxu0
        %622 = vmatprep.mubr.f32.mxu0 0.0
        %623 = vmatmul.mubr.f32.gmra.mrb[0].mxu0 %v524
        %v624 = vpop.f32.mrb[0].mxu0
        %v625 = vadd.f32 %v504, %v624
        %v626 = vpop.f32.mrb[0].mxu0
        %627 = vmatprep.mubr.f32.mxu0 0.0
        %628 = vmatmul.mubr.f32.gmra.mrb[0].mxu0 %v526
        %v629 = vpop.f32.mrb[0].mxu0
        %v630 = vadd.f32 %v509, %v629
        %v631 = vpop.f32.mrb[0].mxu0
        %632 = vdwg.mxu0
        %vm633 = vcmask 1045504
        %v634 = vrot.slane %v324, 2
        %v635 = vrot.slane %v325, 2
        %v636 = vsel %vm633, %v634, %v635
        %v637 = vrot.slane %v326, 2
        %v638 = vrot.slane %v327, 2
        %v639 = vsel %vm633, %v637, %v638
        %v640 = vrot.slane %v328, 2
        %v641 = vrot.slane %v329, 2
        %v642 = vsel %vm633, %v640, %v641
        %v643 = vrot.slane %v330, 2
        %v644 = vrot.slane %v331, 2
        %v645 = vsel %vm633, %v643, %v644
        %v646 = vrot.slane %v332, 2
        %v647 = vrot.slane %v333, 2
        %v648 = vsel %vm633, %v646, %v647
        %v649 = vrot.slane %v334, 2
        %v650 = vrot.slane %v335, 2
        %v651 = vsel %vm633, %v649, %v650
        %v652 = vrot.slane %v336, 2
        %v653 = vrot.slane %v337, 2
        %v654 = vsel %vm633, %v652, %v653
        %v655 = vrot.slane %v338, 2
        %v656 = vrot.slane %v339, 2
        %v657 = vsel %vm633, %v655, %v656
        %s658 = scalar_lea.vmem %s2, 32
        %v659 = vld [vmem:[%s658] sm:$0xff]
        %v660 = vld [vmem:[%s658 + $0x8] sm:$0xff]
        %v661 = vsel %vm390, %v636, 0
        %v663 = vsel %vm390, %v639, 0
        %v665 = vsel %vm390, %v642, 0
        %v667 = vsel %vm390, %v645, 0
        %v669 = vsel %vm390, %v648, 0
        %v671 = vsel %vm390, %v651, 0
        %v673 = vsel %vm390, %v654, 0
        %v675 = vsel %vm390, %v657, 0
        %677 = vmatprep.subr.mxu0 0.0
        %678 = vmatpush1.msra.mxu0 %v659
        %679 = vmatprep.subr.mxu0 0.0
        %680 = vmatpush1.msra.mxu0 %v660
        %681 = vmatprep.subr.mxu0 0.0
        %682 = vmatpush1.msra.mxu0 0.0
        %683 = vmatprep.subr.mxu0 0.0
        %684 = vmatpush1.msra.mxu0 0.0
        %685 = vmatprep.subr.mxu0 0.0
        %686 = vmatpush1.msra.mxu0 0.0
        %687 = vmatprep.subr.mxu0 0.0
        %688 = vmatpush1.msra.mxu0 0.0
        %689 = vmatprep.subr.mxu0 0.0
        %690 = vmatpush1.msra.mxu0 0.0
        %691 = vmatprep.subr.mxu0 0.0
        %692 = vmatpush1.msra.mxu0 0.0
        %693 = vmatprep.subr.mxu0 0.0
        %694 = vmatpush1.msra.mxu0 0.0
        %695 = vmatprep.subr.mxu0 0.0
        %696 = vmatpush1.msra.mxu0 0.0
        %697 = vmatprep.subr.mxu0 0.0
        %698 = vmatpush1.msra.mxu0 0.0
        %699 = vmatprep.subr.mxu0 0.0
        %700 = vmatpush1.msra.mxu0 0.0
        %701 = vmatprep.subr.mxu0 0.0
        %702 = vmatpush1.msra.mxu0 0.0
        %703 = vmatprep.subr.mxu0 0.0
        %704 = vmatpush1.msra.mxu0 0.0
        %705 = vmatprep.subr.mxu0 0.0
        %706 = vmatpush1.msra.mxu0 0.0
        %707 = vmatprep.subr.mxu0 0.0
        %708 = vmatpush1.msra.mxu0 0.0
        %709 = vmatprep.subr.mxu0 0.0
        %710 = vmatpush1.msra.mxu0 0.0
        %711 = vmatprep.subr.mxu0 0.0
        %712 = vmatpush1.msra.mxu0 0.0
        %713 = vmatprep.subr.mxu0 0.0
        %714 = vmatpush1.msra.mxu0 0.0
        %715 = vmatprep.subr.mxu0 0.0
        %716 = vmatpush1.msra.mxu0 0.0
        %717 = vmatprep.subr.mxu0 0.0
        %718 = vmatpush1.msra.mxu0 0.0
        %719 = vmatprep.subr.mxu0 0.0
        %720 = vmatpush1.msra.mxu0 0.0
        %721 = vmatprep.subr.mxu0 0.0
        %722 = vmatpush1.msra.mxu0 0.0
        %723 = vmatprep.subr.mxu0 0.0
        %724 = vmatpush1.msra.mxu0 0.0
        %725 = vmatprep.subr.mxu0 0.0
        %726 = vmatpush1.msra.mxu0 0.0
        %727 = vmatprep.subr.mxu0 0.0
        %728 = vmatpush1.msra.mxu0 0.0
        %729 = vmatprep.subr.mxu0 0.0
        %730 = vmatpush1.msra.mxu0 0.0
        %731 = vmatprep.subr.mxu0 0.0
        %732 = vmatpush1.msra.mxu0 0.0
        %733 = vmatprep.subr.mxu0 0.0
        %734 = vmatpush1.msra.mxu0 0.0
        %735 = vmatprep.subr.mxu0 0.0
        %736 = vmatpush1.msra.mxu0 0.0
        %737 = vmatprep.subr.mxu0 0.0
        %738 = vmatpush1.msra.mxu0 0.0
        %739 = vmatprep.subr.mxu0 0.0
        %740 = vmatpush1.msra.mxu0 0.0
        %741 = vmatprep.mubr.f32.mxu0 0.0
        %742 = vmatmul.mubr.f32.gmra.mrb[0].mxu0 %v661
        %v743 = vpop.f32.mrb[0].mxu0
        %v744 = vadd.f32 0.0, %v743
        %v745 = vpop.f32.mrb[0].mxu0
        %746 = vmatprep.mubr.f32.mxu0 0.0
        %747 = vmatmul.mubr.f32.gmra.mrb[0].mxu0 %v663
        %v748 = vpop.f32.mrb[0].mxu0
        %v749 = vadd.f32 0.0, %v748
        %v750 = vpop.f32.mrb[0].mxu0
        %751 = vmatprep.mubr.f32.mxu0 0.0
        %752 = vmatmul.mubr.f32.gmra.mrb[0].mxu0 %v665
        %v753 = vpop.f32.mrb[0].mxu0
        %v754 = vadd.f32 0.0, %v753
        %v755 = vpop.f32.mrb[0].mxu0
        %756 = vmatprep.mubr.f32.mxu0 0.0
        %757 = vmatmul.mubr.f32.gmra.mrb[0].mxu0 %v667
        %v758 = vpop.f32.mrb[0].mxu0
        %v759 = vadd.f32 0.0, %v758
        %v760 = vpop.f32.mrb[0].mxu0
        %761 = vmatprep.mubr.f32.mxu0 0.0
        %762 = vmatmul.mubr.f32.gmra.mrb[0].mxu0 %v669
        %v763 = vpop.f32.mrb[0].mxu0
        %v764 = vadd.f32 0.0, %v763
        %v765 = vpop.f32.mrb[0].mxu0
        %766 = vmatprep.mubr.f32.mxu0 0.0
        %767 = vmatmul.mubr.f32.gmra.mrb[0].mxu0 %v671
        %v768 = vpop.f32.mrb[0].mxu0
        %v769 = vadd.f32 0.0, %v768
        %v770 = vpop.f32.mrb[0].mxu0
        %771 = vmatprep.mubr.f32.mxu0 0.0
        %772 = vmatmul.mubr.f32.gmra.mrb[0].mxu0 %v673
        %v773 = vpop.f32.mrb[0].mxu0
        %v774 = vadd.f32 0.0, %v773
        %v775 = vpop.f32.mrb[0].mxu0
        %776 = vmatprep.mubr.f32.mxu0 0.0
        %777 = vmatmul.mubr.f32.gmra.mrb[0].mxu0 %v675
        %v778 = vpop.f32.mrb[0].mxu0
        %v779 = vadd.f32 0.0, %v778
        %v780 = vpop.f32.mrb[0].mxu0
        %781 = vdwg.mxu0
        %v782 = vadd.f32 %v595, %v744
        %v783 = vadd.f32 %v600, %v749
        %v784 = vadd.f32 %v605, %v754
        %v785 = vadd.f32 %v610, %v759
        %v786 = vadd.f32 %v615, %v764
        %v787 = vadd.f32 %v620, %v769
        %v788 = vadd.f32 %v625, %v774
        %v789 = vadd.f32 %v630, %v779
        %s790 = scalar_lea.vmem %s2, 48
        %v791 = vld [vmem:[%s790] sm:$0xff]
        %v792 = vld [vmem:[%s790 + $0x8] sm:$0xff]
        %v794 = vsel %vm390, %v340, 0
        %796 = vmatprep.subr.mxu0 0.0
        %797 = vmatpush1.msra.mxu0 %v791
        %798 = vmatprep.subr.mxu0 0.0
        %799 = vmatpush1.msra.mxu0 %v792
        %800 = vmatprep.subr.mxu0 0.0
        %801 = vmatpush1.msra.mxu0 0.0
        %802 = vmatprep.subr.mxu0 0.0
        %803 = vmatpush1.msra.mxu0 0.0
        %804 = vmatprep.subr.mxu0 0.0
        %805 = vmatpush1.msra.mxu0 0.0
        %806 = vmatprep.subr.mxu0 0.0
        %807 = vmatpush1.msra.mxu0 0.0
        %808 = vmatprep.subr.mxu0 0.0
        %809 = vmatpush1.msra.mxu0 0.0
        %810 = vmatprep.subr.mxu0 0.0
        %811 = vmatpush1.msra.mxu0 0.0
        %812 = vmatprep.subr.mxu0 0.0
        %813 = vmatpush1.msra.mxu0 0.0
        %814 = vmatprep.subr.mxu0 0.0
        %815 = vmatpush1.msra.mxu0 0.0
        %816 = vmatprep.subr.mxu0 0.0
        %817 = vmatpush1.msra.mxu0 0.0
        %818 = vmatprep.subr.mxu0 0.0
        %819 = vmatpush1.msra.mxu0 0.0
        %820 = vmatprep.subr.mxu0 0.0
        %821 = vmatpush1.msra.mxu0 0.0
        %822 = vmatprep.subr.mxu0 0.0
        %823 = vmatpush1.msra.mxu0 0.0
        %824 = vmatprep.subr.mxu0 0.0
        %825 = vmatpush1.msra.mxu0 0.0
        %826 = vmatprep.subr.mxu0 0.0
        %827 = vmatpush1.msra.mxu0 0.0
        %828 = vmatprep.subr.mxu0 0.0
        %829 = vmatpush1.msra.mxu0 0.0
        %830 = vmatprep.subr.mxu0 0.0
        %831 = vmatpush1.msra.mxu0 0.0
        %832 = vmatprep.subr.mxu0 0.0
        %833 = vmatpush1.msra.mxu0 0.0
        %834 = vmatprep.subr.mxu0 0.0
        %835 = vmatpush1.msra.mxu0 0.0
        %836 = vmatprep.subr.mxu0 0.0
        %837 = vmatpush1.msra.mxu0 0.0
        %838 = vmatprep.subr.mxu0 0.0
        %839 = vmatpush1.msra.mxu0 0.0
        %840 = vmatprep.subr.mxu0 0.0
        %841 = vmatpush1.msra.mxu0 0.0
        %842 = vmatprep.subr.mxu0 0.0
        %843 = vmatpush1.msra.mxu0 0.0
        %844 = vmatprep.subr.mxu0 0.0
        %845 = vmatpush1.msra.mxu0 0.0
        %846 = vmatprep.subr.mxu0 0.0
        %847 = vmatpush1.msra.mxu0 0.0
        %848 = vmatprep.subr.mxu0 0.0
        %849 = vmatpush1.msra.mxu0 0.0
        %850 = vmatprep.subr.mxu0 0.0
        %851 = vmatpush1.msra.mxu0 0.0
        %852 = vmatprep.subr.mxu0 0.0
        %853 = vmatpush1.msra.mxu0 0.0
        %854 = vmatprep.subr.mxu0 0.0
        %855 = vmatpush1.msra.mxu0 0.0
        %856 = vmatprep.subr.mxu0 0.0
        %857 = vmatpush1.msra.mxu0 0.0
        %858 = vmatprep.subr.mxu0 0.0
        %859 = vmatpush1.msra.mxu0 0.0
        %860 = vmatprep.mubr.f32.mxu0 0.0
        %861 = vmatmul.mubr.f32.gmra.mrb[0].mxu0 %v514
        %v862 = vpop.f32.mrb[0].mxu0
        %v863 = vadd.f32 0.0, %v862
        %v864 = vpop.f32.mrb[0].mxu0
        %865 = vmatprep.mubr.f32.mxu0 0.0
        %866 = vmatmul.mubr.f32.gmra.mrb[0].mxu0 %v516
        %v867 = vpop.f32.mrb[0].mxu0
        %v868 = vadd.f32 0.0, %v867
        %v869 = vpop.f32.mrb[0].mxu0
        %870 = vmatprep.mubr.f32.mxu0 0.0
        %871 = vmatmul.mubr.f32.gmra.mrb[0].mxu0 %v518
        %v872 = vpop.f32.mrb[0].mxu0
        %v873 = vadd.f32 0.0, %v872
        %v874 = vpop.f32.mrb[0].mxu0
        %875 = vmatprep.mubr.f32.mxu0 0.0
        %876 = vmatmul.mubr.f32.gmra.mrb[0].mxu0 %v520
        %v877 = vpop.f32.mrb[0].mxu0
        %v878 = vadd.f32 0.0, %v877
        %v879 = vpop.f32.mrb[0].mxu0
        %880 = vmatprep.mubr.f32.mxu0 0.0
        %881 = vmatmul.mubr.f32.gmra.mrb[0].mxu0 %v522
        %v882 = vpop.f32.mrb[0].mxu0
        %v883 = vadd.f32 0.0, %v882
        %v884 = vpop.f32.mrb[0].mxu0
        %885 = vmatprep.mubr.f32.mxu0 0.0
        %886 = vmatmul.mubr.f32.gmra.mrb[0].mxu0 %v524
        %v887 = vpop.f32.mrb[0].mxu0
        %v888 = vadd.f32 0.0, %v887
        %v889 = vpop.f32.mrb[0].mxu0
        %890 = vmatprep.mubr.f32.mxu0 0.0
        %891 = vmatmul.mubr.f32.gmra.mrb[0].mxu0 %v526
        %v892 = vpop.f32.mrb[0].mxu0
        %v893 = vadd.f32 0.0, %v892
        %v894 = vpop.f32.mrb[0].mxu0
        %895 = vmatprep.mubr.f32.mxu0 0.0
        %896 = vmatmul.mubr.f32.gmra.mrb[0].mxu0 %v794
        %v897 = vpop.f32.mrb[0].mxu0
        %v898 = vadd.f32 0.0, %v897
        %v899 = vpop.f32.mrb[0].mxu0
        %900 = vdwg.mxu0
        %v901 = vadd.f32 %v782, %v863
        %v902 = vadd.f32 %v783, %v868
        %v903 = vadd.f32 %v784, %v873
        %v904 = vadd.f32 %v785, %v878
        %v905 = vadd.f32 %v786, %v883
        %v906 = vadd.f32 %v787, %v888
        %v907 = vadd.f32 %v788, %v893
        %v908 = vadd.f32 %v789, %v898
        %v910 = vrot.slane %v340, 1
        %v911 = vrot.slane %v341, 1
        %v912 = vsel %vm362, %v910, %v911
        %s913 = scalar_lea.vmem %s2, 64
        %v914 = vld [vmem:[%s913] sm:$0xff]
        %v915 = vld [vmem:[%s913 + $0x8] sm:$0xff]
        %v916 = vsel %vm390, %v912, 0
        %918 = vmatprep.subr.mxu0 0.0
        %919 = vmatpush1.msra.mxu0 %v914
        %920 = vmatprep.subr.mxu0 0.0
        %921 = vmatpush1.msra.mxu0 %v915
        %922 = vmatprep.subr.mxu0 0.0
        %923 = vmatpush1.msra.mxu0 0.0
        %924 = vmatprep.subr.mxu0 0.0
        %925 = vmatpush1.msra.mxu0 0.0
        %926 = vmatprep.subr.mxu0 0.0
        %927 = vmatpush1.msra.mxu0 0.0
        %928 = vmatprep.subr.mxu0 0.0
        %929 = vmatpush1.msra.mxu0 0.0
        %930 = vmatprep.subr.mxu0 0.0
        %931 = vmatpush1.msra.mxu0 0.0
        %932 = vmatprep.subr.mxu0 0.0
        %933 = vmatpush1.msra.mxu0 0.0
        %934 = vmatprep.subr.mxu0 0.0
        %935 = vmatpush1.msra.mxu0 0.0
        %936 = vmatprep.subr.mxu0 0.0
        %937 = vmatpush1.msra.mxu0 0.0
        %938 = vmatprep.subr.mxu0 0.0
        %939 = vmatpush1.msra.mxu0 0.0
        %940 = vmatprep.subr.mxu0 0.0
        %941 = vmatpush1.msra.mxu0 0.0
        %942 = vmatprep.subr.mxu0 0.0
        %943 = vmatpush1.msra.mxu0 0.0
        %944 = vmatprep.subr.mxu0 0.0
        %945 = vmatpush1.msra.mxu0 0.0
        %946 = vmatprep.subr.mxu0 0.0
        %947 = vmatpush1.msra.mxu0 0.0
        %948 = vmatprep.subr.mxu0 0.0
        %949 = vmatpush1.msra.mxu0 0.0
        %950 = vmatprep.subr.mxu0 0.0
        %951 = vmatpush1.msra.mxu0 0.0
        %952 = vmatprep.subr.mxu0 0.0
        %953 = vmatpush1.msra.mxu0 0.0
        %954 = vmatprep.subr.mxu0 0.0
        %955 = vmatpush1.msra.mxu0 0.0
        %956 = vmatprep.subr.mxu0 0.0
        %957 = vmatpush1.msra.mxu0 0.0
        %958 = vmatprep.subr.mxu0 0.0
        %959 = vmatpush1.msra.mxu0 0.0
        %960 = vmatprep.subr.mxu0 0.0
        %961 = vmatpush1.msra.mxu0 0.0
        %962 = vmatprep.subr.mxu0 0.0
        %963 = vmatpush1.msra.mxu0 0.0
        %964 = vmatprep.subr.mxu0 0.0
        %965 = vmatpush1.msra.mxu0 0.0
        %966 = vmatprep.subr.mxu0 0.0
        %967 = vmatpush1.msra.mxu0 0.0
        %968 = vmatprep.subr.mxu0 0.0
        %969 = vmatpush1.msra.mxu0 0.0
        %970 = vmatprep.subr.mxu0 0.0
        %971 = vmatpush1.msra.mxu0 0.0
        %972 = vmatprep.subr.mxu0 0.0
        %973 = vmatpush1.msra.mxu0 0.0
        %974 = vmatprep.subr.mxu0 0.0
        %975 = vmatpush1.msra.mxu0 0.0
        %976 = vmatprep.subr.mxu0 0.0
        %977 = vmatpush1.msra.mxu0 0.0
        %978 = vmatprep.subr.mxu0 0.0
        %979 = vmatpush1.msra.mxu0 0.0
        %980 = vmatprep.subr.mxu0 0.0
        %981 = vmatpush1.msra.mxu0 0.0
        %982 = vmatprep.mubr.f32.mxu0 0.0
        %983 = vmatmul.mubr.f32.gmra.mrb[0].mxu0 %v393
        %v984 = vpop.f32.mrb[0].mxu0
        %v985 = vadd.f32 0.0, %v984
        %v986 = vpop.f32.mrb[0].mxu0
        %987 = vmatprep.mubr.f32.mxu0 0.0
        %988 = vmatmul.mubr.f32.gmra.mrb[0].mxu0 %v395
        %v989 = vpop.f32.mrb[0].mxu0
        %v990 = vadd.f32 0.0, %v989
        %v991 = vpop.f32.mrb[0].mxu0
        %992 = vmatprep.mubr.f32.mxu0 0.0
        %993 = vmatmul.mubr.f32.gmra.mrb[0].mxu0 %v397
        %v994 = vpop.f32.mrb[0].mxu0
        %v995 = vadd.f32 0.0, %v994
        %v996 = vpop.f32.mrb[0].mxu0
        %997 = vmatprep.mubr.f32.mxu0 0.0
        %998 = vmatmul.mubr.f32.gmra.mrb[0].mxu0 %v399
        %v999 = vpop.f32.mrb[0].mxu0
        %v1000 = vadd.f32 0.0, %v999
        %v1001 = vpop.f32.mrb[0].mxu0
        %1002 = vmatprep.mubr.f32.mxu0 0.0
        %1003 = vmatmul.mubr.f32.gmra.mrb[0].mxu0 %v401
        %v1004 = vpop.f32.mrb[0].mxu0
        %v1005 = vadd.f32 0.0, %v1004
        %v1006 = vpop.f32.mrb[0].mxu0
        %1007 = vmatprep.mubr.f32.mxu0 0.0
        %1008 = vmatmul.mubr.f32.gmra.mrb[0].mxu0 %v403
        %v1009 = vpop.f32.mrb[0].mxu0
        %v1010 = vadd.f32 0.0, %v1009
        %v1011 = vpop.f32.mrb[0].mxu0
        %1012 = vmatprep.mubr.f32.mxu0 0.0
        %1013 = vmatmul.mubr.f32.gmra.mrb[0].mxu0 %v405
        %v1014 = vpop.f32.mrb[0].mxu0
        %v1015 = vadd.f32 0.0, %v1014
        %v1016 = vpop.f32.mrb[0].mxu0
        %1017 = vmatprep.mubr.f32.mxu0 0.0
        %1018 = vmatmul.mubr.f32.gmra.mrb[0].mxu0 %v916
        %v1019 = vpop.f32.mrb[0].mxu0
        %v1020 = vadd.f32 0.0, %v1019
        %v1021 = vpop.f32.mrb[0].mxu0
        %1022 = vdwg.mxu0
        %v1023 = vadd.f32 %v901, %v985
        %v1024 = vadd.f32 %v902, %v990
        %v1025 = vadd.f32 %v903, %v995
        %v1026 = vadd.f32 %v904, %v1000
        %v1027 = vadd.f32 %v905, %v1005
        %v1028 = vadd.f32 %v906, %v1010
        %v1029 = vadd.f32 %v907, %v1015
        %v1030 = vadd.f32 %v908, %v1020
        %v1031 = vrot.slane %v340, 2
        %v1032 = vrot.slane %v341, 2
        %v1033 = vsel %vm633, %v1031, %v1032
        %s1034 = scalar_lea.vmem %s2, 80
        %v1035 = vld [vmem:[%s1034] sm:$0xff]
        %v1036 = vld [vmem:[%s1034 + $0x8] sm:$0xff]
        %v1037 = vsel %vm390, %v1033, 0
        %1039 = vmatprep.subr.mxu0 0.0
        %1040 = vmatpush1.msra.mxu0 %v1035
        %1041 = vmatprep.subr.mxu0 0.0
        %1042 = vmatpush1.msra.mxu0 %v1036
        %1043 = vmatprep.subr.mxu0 0.0
        %1044 = vmatpush1.msra.mxu0 0.0
        %1045 = vmatprep.subr.mxu0 0.0
        %1046 = vmatpush1.msra.mxu0 0.0
        %1047 = vmatprep.subr.mxu0 0.0
        %1048 = vmatpush1.msra.mxu0 0.0
        %1049 = vmatprep.subr.mxu0 0.0
        %1050 = vmatpush1.msra.mxu0 0.0
        %1051 = vmatprep.subr.mxu0 0.0
        %1052 = vmatpush1.msra.mxu0 0.0
        %1053 = vmatprep.subr.mxu0 0.0
        %1054 = vmatpush1.msra.mxu0 0.0
        %1055 = vmatprep.subr.mxu0 0.0
        %1056 = vmatpush1.msra.mxu0 0.0
        %1057 = vmatprep.subr.mxu0 0.0
        %1058 = vmatpush1.msra.mxu0 0.0
        %1059 = vmatprep.subr.mxu0 0.0
        %1060 = vmatpush1.msra.mxu0 0.0
        %1061 = vmatprep.subr.mxu0 0.0
        %1062 = vmatpush1.msra.mxu0 0.0
        %1063 = vmatprep.subr.mxu0 0.0
        %1064 = vmatpush1.msra.mxu0 0.0
        %1065 = vmatprep.subr.mxu0 0.0
        %1066 = vmatpush1.msra.mxu0 0.0
        %1067 = vmatprep.subr.mxu0 0.0
        %1068 = vmatpush1.msra.mxu0 0.0
        %1069 = vmatprep.subr.mxu0 0.0
        %1070 = vmatpush1.msra.mxu0 0.0
        %1071 = vmatprep.subr.mxu0 0.0
        %1072 = vmatpush1.msra.mxu0 0.0
        %1073 = vmatprep.subr.mxu0 0.0
        %1074 = vmatpush1.msra.mxu0 0.0
        %1075 = vmatprep.subr.mxu0 0.0
        %1076 = vmatpush1.msra.mxu0 0.0
        %1077 = vmatprep.subr.mxu0 0.0
        %1078 = vmatpush1.msra.mxu0 0.0
        %1079 = vmatprep.subr.mxu0 0.0
        %1080 = vmatpush1.msra.mxu0 0.0
        %1081 = vmatprep.subr.mxu0 0.0
        %1082 = vmatpush1.msra.mxu0 0.0
        %1083 = vmatprep.subr.mxu0 0.0
        %1084 = vmatpush1.msra.mxu0 0.0
        %1085 = vmatprep.subr.mxu0 0.0
        %1086 = vmatpush1.msra.mxu0 0.0
        %1087 = vmatprep.subr.mxu0 0.0
        %1088 = vmatpush1.msra.mxu0 0.0
        %1089 = vmatprep.subr.mxu0 0.0
        %1090 = vmatpush1.msra.mxu0 0.0
        %1091 = vmatprep.subr.mxu0 0.0
        %1092 = vmatpush1.msra.mxu0 0.0
        %1093 = vmatprep.subr.mxu0 0.0
        %1094 = vmatpush1.msra.mxu0 0.0
        %1095 = vmatprep.subr.mxu0 0.0
        %1096 = vmatpush1.msra.mxu0 0.0
        %1097 = vmatprep.subr.mxu0 0.0
        %1098 = vmatpush1.msra.mxu0 0.0
        %1099 = vmatprep.subr.mxu0 0.0
        %1100 = vmatpush1.msra.mxu0 0.0
        %1101 = vmatprep.subr.mxu0 0.0
        %1102 = vmatpush1.msra.mxu0 0.0
        %1103 = vmatprep.mubr.f32.mxu0 0.0
        %1104 = vmatmul.mubr.f32.gmra.mrb[0].mxu0 %v663
        %v1105 = vpop.f32.mrb[0].mxu0
        %v1106 = vadd.f32 0.0, %v1105
        %v1107 = vpop.f32.mrb[0].mxu0
        %1108 = vmatprep.mubr.f32.mxu0 0.0
        %1109 = vmatmul.mubr.f32.gmra.mrb[0].mxu0 %v665
        %v1110 = vpop.f32.mrb[0].mxu0
        %v1111 = vadd.f32 0.0, %v1110
        %v1112 = vpop.f32.mrb[0].mxu0
        %1113 = vmatprep.mubr.f32.mxu0 0.0
        %1114 = vmatmul.mubr.f32.gmra.mrb[0].mxu0 %v667
        %v1115 = vpop.f32.mrb[0].mxu0
        %v1116 = vadd.f32 0.0, %v1115
        %v1117 = vpop.f32.mrb[0].mxu0
        %1118 = vmatprep.mubr.f32.mxu0 0.0
        %1119 = vmatmul.mubr.f32.gmra.mrb[0].mxu0 %v669
        %v1120 = vpop.f32.mrb[0].mxu0
        %v1121 = vadd.f32 0.0, %v1120
        %v1122 = vpop.f32.mrb[0].mxu0
        %1123 = vmatprep.mubr.f32.mxu0 0.0
        %1124 = vmatmul.mubr.f32.gmra.mrb[0].mxu0 %v671
        %v1125 = vpop.f32.mrb[0].mxu0
        %v1126 = vadd.f32 0.0, %v1125
        %v1127 = vpop.f32.mrb[0].mxu0
        %1128 = vmatprep.mubr.f32.mxu0 0.0
        %1129 = vmatmul.mubr.f32.gmra.mrb[0].mxu0 %v673
        %v1130 = vpop.f32.mrb[0].mxu0
        %v1131 = vadd.f32 0.0, %v1130
        %v1132 = vpop.f32.mrb[0].mxu0
        %1133 = vmatprep.mubr.f32.mxu0 0.0
        %1134 = vmatmul.mubr.f32.gmra.mrb[0].mxu0 %v675
        %v1135 = vpop.f32.mrb[0].mxu0
        %v1136 = vadd.f32 0.0, %v1135
        %v1137 = vpop.f32.mrb[0].mxu0
        %1138 = vmatprep.mubr.f32.mxu0 0.0
        %1139 = vmatmul.mubr.f32.gmra.mrb[0].mxu0 %v1037
        %v1140 = vpop.f32.mrb[0].mxu0
        %v1141 = vadd.f32 0.0, %v1140
        %v1142 = vpop.f32.mrb[0].mxu0
        %1143 = vdwg.mxu0
        %v1144 = vadd.f32 %v1023, %v1106
        %v1145 = vadd.f32 %v1024, %v1111
        %v1146 = vadd.f32 %v1025, %v1116
        %v1147 = vadd.f32 %v1026, %v1121
        %v1148 = vadd.f32 %v1027, %v1126
        %v1149 = vadd.f32 %v1028, %v1131
        %v1150 = vadd.f32 %v1029, %v1136
        %v1151 = vadd.f32 %v1030, %v1141
        %s1152 = scalar_lea.vmem %s2, 96
        %v1153 = vld [vmem:[%s1152] sm:$0xff]
        %v1154 = vld [vmem:[%s1152 + $0x8] sm:$0xff]
        %v1156 = vsel %vm390, %v342, 0
        %1158 = vmatprep.subr.mxu0 0.0
        %1159 = vmatpush1.msra.mxu0 %v1153
        %1160 = vmatprep.subr.mxu0 0.0
        %1161 = vmatpush1.msra.mxu0 %v1154
        %1162 = vmatprep.subr.mxu0 0.0
        %1163 = vmatpush1.msra.mxu0 0.0
        %1164 = vmatprep.subr.mxu0 0.0
        %1165 = vmatpush1.msra.mxu0 0.0
        %1166 = vmatprep.subr.mxu0 0.0
        %1167 = vmatpush1.msra.mxu0 0.0
        %1168 = vmatprep.subr.mxu0 0.0
        %1169 = vmatpush1.msra.mxu0 0.0
        %1170 = vmatprep.subr.mxu0 0.0
        %1171 = vmatpush1.msra.mxu0 0.0
        %1172 = vmatprep.subr.mxu0 0.0
        %1173 = vmatpush1.msra.mxu0 0.0
        %1174 = vmatprep.subr.mxu0 0.0
        %1175 = vmatpush1.msra.mxu0 0.0
        %1176 = vmatprep.subr.mxu0 0.0
        %1177 = vmatpush1.msra.mxu0 0.0
        %1178 = vmatprep.subr.mxu0 0.0
        %1179 = vmatpush1.msra.mxu0 0.0
        %1180 = vmatprep.subr.mxu0 0.0
        %1181 = vmatpush1.msra.mxu0 0.0
        %1182 = vmatprep.subr.mxu0 0.0
        %1183 = vmatpush1.msra.mxu0 0.0
        %1184 = vmatprep.subr.mxu0 0.0
        %1185 = vmatpush1.msra.mxu0 0.0
        %1186 = vmatprep.subr.mxu0 0.0
        %1187 = vmatpush1.msra.mxu0 0.0
        %1188 = vmatprep.subr.mxu0 0.0
        %1189 = vmatpush1.msra.mxu0 0.0
        %1190 = vmatprep.subr.mxu0 0.0
        %1191 = vmatpush1.msra.mxu0 0.0
        %1192 = vmatprep.subr.mxu0 0.0
        %1193 = vmatpush1.msra.mxu0 0.0
        %1194 = vmatprep.subr.mxu0 0.0
        %1195 = vmatpush1.msra.mxu0 0.0
        %1196 = vmatprep.subr.mxu0 0.0
        %1197 = vmatpush1.msra.mxu0 0.0
        %1198 = vmatprep.subr.mxu0 0.0
        %1199 = vmatpush1.msra.mxu0 0.0
        %1200 = vmatprep.subr.mxu0 0.0
        %1201 = vmatpush1.msra.mxu0 0.0
        %1202 = vmatprep.subr.mxu0 0.0
        %1203 = vmatpush1.msra.mxu0 0.0
        %1204 = vmatprep.subr.mxu0 0.0
        %1205 = vmatpush1.msra.mxu0 0.0
        %1206 = vmatprep.subr.mxu0 0.0
        %1207 = vmatpush1.msra.mxu0 0.0
        %1208 = vmatprep.subr.mxu0 0.0
        %1209 = vmatpush1.msra.mxu0 0.0
        %1210 = vmatprep.subr.mxu0 0.0
        %1211 = vmatpush1.msra.mxu0 0.0
        %1212 = vmatprep.subr.mxu0 0.0
        %1213 = vmatpush1.msra.mxu0 0.0
        %1214 = vmatprep.subr.mxu0 0.0
        %1215 = vmatpush1.msra.mxu0 0.0
        %1216 = vmatprep.subr.mxu0 0.0
        %1217 = vmatpush1.msra.mxu0 0.0
        %1218 = vmatprep.subr.mxu0 0.0
        %1219 = vmatpush1.msra.mxu0 0.0
        %1220 = vmatprep.subr.mxu0 0.0
        %1221 = vmatpush1.msra.mxu0 0.0
        %1222 = vmatprep.mubr.f32.mxu0 0.0
        %1223 = vmatmul.mubr.f32.gmra.mrb[0].mxu0 %v516
        %v1224 = vpop.f32.mrb[0].mxu0
        %v1225 = vadd.f32 0.0, %v1224
        %v1226 = vpop.f32.mrb[0].mxu0
        %1227 = vmatprep.mubr.f32.mxu0 0.0
        %1228 = vmatmul.mubr.f32.gmra.mrb[0].mxu0 %v518
        %v1229 = vpop.f32.mrb[0].mxu0
        %v1230 = vadd.f32 0.0, %v1229
        %v1231 = vpop.f32.mrb[0].mxu0
        %1232 = vmatprep.mubr.f32.mxu0 0.0
        %1233 = vmatmul.mubr.f32.gmra.mrb[0].mxu0 %v520
        %v1234 = vpop.f32.mrb[0].mxu0
        %v1235 = vadd.f32 0.0, %v1234
        %v1236 = vpop.f32.mrb[0].mxu0
        %1237 = vmatprep.mubr.f32.mxu0 0.0
        %1238 = vmatmul.mubr.f32.gmra.mrb[0].mxu0 %v522
        %v1239 = vpop.f32.mrb[0].mxu0
        %v1240 = vadd.f32 0.0, %v1239
        %v1241 = vpop.f32.mrb[0].mxu0
        %1242 = vmatprep.mubr.f32.mxu0 0.0
        %1243 = vmatmul.mubr.f32.gmra.mrb[0].mxu0 %v524
        %v1244 = vpop.f32.mrb[0].mxu0
        %v1245 = vadd.f32 0.0, %v1244
        %v1246 = vpop.f32.mrb[0].mxu0
        %1247 = vmatprep.mubr.f32.mxu0 0.0
        %1248 = vmatmul.mubr.f32.gmra.mrb[0].mxu0 %v526
        %v1249 = vpop.f32.mrb[0].mxu0
        %v1250 = vadd.f32 0.0, %v1249
        %v1251 = vpop.f32.mrb[0].mxu0
        %1252 = vmatprep.mubr.f32.mxu0 0.0
        %1253 = vmatmul.mubr.f32.gmra.mrb[0].mxu0 %v794
        %v1254 = vpop.f32.mrb[0].mxu0
        %v1255 = vadd.f32 0.0, %v1254
        %v1256 = vpop.f32.mrb[0].mxu0
        %1257 = vmatprep.mubr.f32.mxu0 0.0
        %1258 = vmatmul.mubr.f32.gmra.mrb[0].mxu0 %v1156
        %v1259 = vpop.f32.mrb[0].mxu0
        %v1260 = vadd.f32 0.0, %v1259
        %v1261 = vpop.f32.mrb[0].mxu0
        %1262 = vdwg.mxu0
        %v1263 = vadd.f32 %v1144, %v1225
        %v1264 = vadd.f32 %v1145, %v1230
        %v1265 = vadd.f32 %v1146, %v1235
        %v1266 = vadd.f32 %v1147, %v1240
        %v1267 = vadd.f32 %v1148, %v1245
        %v1268 = vadd.f32 %v1149, %v1250
        %v1269 = vadd.f32 %v1150, %v1255
        %v1270 = vadd.f32 %v1151, %v1260
        %v1272 = vrot.slane %v342, 1
        %v1273 = vrot.slane %v343, 1
        %v1274 = vsel %vm362, %v1272, %v1273
        %s1275 = scalar_lea.vmem %s2, 112
        %v1276 = vld [vmem:[%s1275] sm:$0xff]
        %v1277 = vld [vmem:[%s1275 + $0x8] sm:$0xff]
        %v1278 = vsel %vm390, %v1274, 0
        %1280 = vmatprep.subr.mxu0 0.0
        %1281 = vmatpush1.msra.mxu0 %v1276
        %1282 = vmatprep.subr.mxu0 0.0
        %1283 = vmatpush1.msra.mxu0 %v1277
        %1284 = vmatprep.subr.mxu0 0.0
        %1285 = vmatpush1.msra.mxu0 0.0
        %1286 = vmatprep.subr.mxu0 0.0
        %1287 = vmatpush1.msra.mxu0 0.0
        %1288 = vmatprep.subr.mxu0 0.0
        %1289 = vmatpush1.msra.mxu0 0.0
        %1290 = vmatprep.subr.mxu0 0.0
        %1291 = vmatpush1.msra.mxu0 0.0
        %1292 = vmatprep.subr.mxu0 0.0
        %1293 = vmatpush1.msra.mxu0 0.0
        %1294 = vmatprep.subr.mxu0 0.0
        %1295 = vmatpush1.msra.mxu0 0.0
        %1296 = vmatprep.subr.mxu0 0.0
        %1297 = vmatpush1.msra.mxu0 0.0
        %1298 = vmatprep.subr.mxu0 0.0
        %1299 = vmatpush1.msra.mxu0 0.0
        %1300 = vmatprep.subr.mxu0 0.0
        %1301 = vmatpush1.msra.mxu0 0.0
        %1302 = vmatprep.subr.mxu0 0.0
        %1303 = vmatpush1.msra.mxu0 0.0
        %1304 = vmatprep.subr.mxu0 0.0
        %1305 = vmatpush1.msra.mxu0 0.0
        %1306 = vmatprep.subr.mxu0 0.0
        %1307 = vmatpush1.msra.mxu0 0.0
        %1308 = vmatprep.subr.mxu0 0.0
        %1309 = vmatpush1.msra.mxu0 0.0
        %1310 = vmatprep.subr.mxu0 0.0
        %1311 = vmatpush1.msra.mxu0 0.0
        %1312 = vmatprep.subr.mxu0 0.0
        %1313 = vmatpush1.msra.mxu0 0.0
        %1314 = vmatprep.subr.mxu0 0.0
        %1315 = vmatpush1.msra.mxu0 0.0
        %1316 = vmatprep.subr.mxu0 0.0
        %1317 = vmatpush1.msra.mxu0 0.0
        %1318 = vmatprep.subr.mxu0 0.0
        %1319 = vmatpush1.msra.mxu0 0.0
        %1320 = vmatprep.subr.mxu0 0.0
        %1321 = vmatpush1.msra.mxu0 0.0
        %1322 = vmatprep.subr.mxu0 0.0
        %1323 = vmatpush1.msra.mxu0 0.0
        %1324 = vmatprep.subr.mxu0 0.0
        %1325 = vmatpush1.msra.mxu0 0.0
        %1326 = vmatprep.subr.mxu0 0.0
        %1327 = vmatpush1.msra.mxu0 0.0
        %1328 = vmatprep.subr.mxu0 0.0
        %1329 = vmatpush1.msra.mxu0 0.0
        %1330 = vmatprep.subr.mxu0 0.0
        %1331 = vmatpush1.msra.mxu0 0.0
        %1332 = vmatprep.subr.mxu0 0.0
        %1333 = vmatpush1.msra.mxu0 0.0
        %1334 = vmatprep.subr.mxu0 0.0
        %1335 = vmatpush1.msra.mxu0 0.0
        %1336 = vmatprep.subr.mxu0 0.0
        %1337 = vmatpush1.msra.mxu0 0.0
        %1338 = vmatprep.subr.mxu0 0.0
        %1339 = vmatpush1.msra.mxu0 0.0
        %1340 = vmatprep.subr.mxu0 0.0
        %1341 = vmatpush1.msra.mxu0 0.0
        %1342 = vmatprep.subr.mxu0 0.0
        %1343 = vmatpush1.msra.mxu0 0.0
        %1344 = vmatprep.mubr.f32.mxu0 0.0
        %1345 = vmatmul.mubr.f32.gmra.mrb[0].mxu0 %v395
        %v1346 = vpop.f32.mrb[0].mxu0
        %v1347 = vadd.f32 0.0, %v1346
        %v1348 = vpop.f32.mrb[0].mxu0
        %1349 = vmatprep.mubr.f32.mxu0 0.0
        %1350 = vmatmul.mubr.f32.gmra.mrb[0].mxu0 %v397
        %v1351 = vpop.f32.mrb[0].mxu0
        %v1352 = vadd.f32 0.0, %v1351
        %v1353 = vpop.f32.mrb[0].mxu0
        %1354 = vmatprep.mubr.f32.mxu0 0.0
        %1355 = vmatmul.mubr.f32.gmra.mrb[0].mxu0 %v399
        %v1356 = vpop.f32.mrb[0].mxu0
        %v1357 = vadd.f32 0.0, %v1356
        %v1358 = vpop.f32.mrb[0].mxu0
        %1359 = vmatprep.mubr.f32.mxu0 0.0
        %1360 = vmatmul.mubr.f32.gmra.mrb[0].mxu0 %v401
        %v1361 = vpop.f32.mrb[0].mxu0
        %v1362 = vadd.f32 0.0, %v1361
        %v1363 = vpop.f32.mrb[0].mxu0
        %1364 = vmatprep.mubr.f32.mxu0 0.0
        %1365 = vmatmul.mubr.f32.gmra.mrb[0].mxu0 %v403
        %v1366 = vpop.f32.mrb[0].mxu0
        %v1367 = vadd.f32 0.0, %v1366
        %v1368 = vpop.f32.mrb[0].mxu0
        %1369 = vmatprep.mubr.f32.mxu0 0.0
        %1370 = vmatmul.mubr.f32.gmra.mrb[0].mxu0 %v405
        %v1371 = vpop.f32.mrb[0].mxu0
        %v1372 = vadd.f32 0.0, %v1371
        %v1373 = vpop.f32.mrb[0].mxu0
        %1374 = vmatprep.mubr.f32.mxu0 0.0
        %1375 = vmatmul.mubr.f32.gmra.mrb[0].mxu0 %v916
        %v1376 = vpop.f32.mrb[0].mxu0
        %v1377 = vadd.f32 0.0, %v1376
        %v1378 = vpop.f32.mrb[0].mxu0
        %1379 = vmatprep.mubr.f32.mxu0 0.0
        %1380 = vmatmul.mubr.f32.gmra.mrb[0].mxu0 %v1278
        %v1381 = vpop.f32.mrb[0].mxu0
        %v1382 = vadd.f32 0.0, %v1381
        %v1383 = vpop.f32.mrb[0].mxu0
        %1384 = vdwg.mxu0
        %v1385 = vadd.f32 %v1263, %v1347
        %v1386 = vadd.f32 %v1264, %v1352
        %v1387 = vadd.f32 %v1265, %v1357
        %v1388 = vadd.f32 %v1266, %v1362
        %v1389 = vadd.f32 %v1267, %v1367
        %v1390 = vadd.f32 %v1268, %v1372
        %v1391 = vadd.f32 %v1269, %v1377
        %v1392 = vadd.f32 %v1270, %v1382
        %v1393 = vrot.slane %v342, 2
        %v1394 = vrot.slane %v343, 2
        %v1395 = vsel %vm633, %v1393, %v1394
        %s1396 = scalar_lea.vmem %s2, 128
        %v1397 = vld [vmem:[%s1396] sm:$0xff]
        %v1398 = vld [vmem:[%s1396 + $0x8] sm:$0xff]
        %v1399 = vsel %vm390, %v1395, 0
        %1401 = vmatprep.subr.mxu0 0.0
        %1402 = vmatpush1.msra.mxu0 %v1397
        %1403 = vmatprep.subr.mxu0 0.0
        %1404 = vmatpush1.msra.mxu0 %v1398
        %1405 = vmatprep.subr.mxu0 0.0
        %1406 = vmatpush1.msra.mxu0 0.0
        %1407 = vmatprep.subr.mxu0 0.0
        %1408 = vmatpush1.msra.mxu0 0.0
        %1409 = vmatprep.subr.mxu0 0.0
        %1410 = vmatpush1.msra.mxu0 0.0
        %1411 = vmatprep.subr.mxu0 0.0
        %1412 = vmatpush1.msra.mxu0 0.0
        %1413 = vmatprep.subr.mxu0 0.0
        %1414 = vmatpush1.msra.mxu0 0.0
        %1415 = vmatprep.subr.mxu0 0.0
        %1416 = vmatpush1.msra.mxu0 0.0
        %1417 = vmatprep.subr.mxu0 0.0
        %1418 = vmatpush1.msra.mxu0 0.0
        %1419 = vmatprep.subr.mxu0 0.0
        %1420 = vmatpush1.msra.mxu0 0.0
        %1421 = vmatprep.subr.mxu0 0.0
        %1422 = vmatpush1.msra.mxu0 0.0
        %1423 = vmatprep.subr.mxu0 0.0
        %1424 = vmatpush1.msra.mxu0 0.0
        %1425 = vmatprep.subr.mxu0 0.0
        %1426 = vmatpush1.msra.mxu0 0.0
        %1427 = vmatprep.subr.mxu0 0.0
        %1428 = vmatpush1.msra.mxu0 0.0
        %1429 = vmatprep.subr.mxu0 0.0
        %1430 = vmatpush1.msra.mxu0 0.0
        %1431 = vmatprep.subr.mxu0 0.0
        %1432 = vmatpush1.msra.mxu0 0.0
        %1433 = vmatprep.subr.mxu0 0.0
        %1434 = vmatpush1.msra.mxu0 0.0
        %1435 = vmatprep.subr.mxu0 0.0
        %1436 = vmatpush1.msra.mxu0 0.0
        %1437 = vmatprep.subr.mxu0 0.0
        %1438 = vmatpush1.msra.mxu0 0.0
        %1439 = vmatprep.subr.mxu0 0.0
        %1440 = vmatpush1.msra.mxu0 0.0
        %1441 = vmatprep.subr.mxu0 0.0
        %1442 = vmatpush1.msra.mxu0 0.0
        %1443 = vmatprep.subr.mxu0 0.0
        %1444 = vmatpush1.msra.mxu0 0.0
        %1445 = vmatprep.subr.mxu0 0.0
        %1446 = vmatpush1.msra.mxu0 0.0
        %1447 = vmatprep.subr.mxu0 0.0
        %1448 = vmatpush1.msra.mxu0 0.0
        %1449 = vmatprep.subr.mxu0 0.0
        %1450 = vmatpush1.msra.mxu0 0.0
        %1451 = vmatprep.subr.mxu0 0.0
        %1452 = vmatpush1.msra.mxu0 0.0
        %1453 = vmatprep.subr.mxu0 0.0
        %1454 = vmatpush1.msra.mxu0 0.0
        %1455 = vmatprep.subr.mxu0 0.0
        %1456 = vmatpush1.msra.mxu0 0.0
        %1457 = vmatprep.subr.mxu0 0.0
        %1458 = vmatpush1.msra.mxu0 0.0
        %1459 = vmatprep.subr.mxu0 0.0
        %1460 = vmatpush1.msra.mxu0 0.0
        %1461 = vmatprep.subr.mxu0 0.0
        %1462 = vmatpush1.msra.mxu0 0.0
        %1463 = vmatprep.subr.mxu0 0.0
        %1464 = vmatpush1.msra.mxu0 0.0
        %1465 = vmatprep.mubr.f32.mxu0 0.0
        %1466 = vmatmul.mubr.f32.gmra.mrb[0].mxu0 %v665
        %v1467 = vpop.f32.mrb[0].mxu0
        %v1468 = vadd.f32 0.0, %v1467
        %v1469 = vpop.f32.mrb[0].mxu0
        %1470 = vmatprep.mubr.f32.mxu0 0.0
        %1471 = vmatmul.mubr.f32.gmra.mrb[0].mxu0 %v667
        %v1472 = vpop.f32.mrb[0].mxu0
        %v1473 = vadd.f32 0.0, %v1472
        %v1474 = vpop.f32.mrb[0].mxu0
        %1475 = vmatprep.mubr.f32.mxu0 0.0
        %1476 = vmatmul.mubr.f32.gmra.mrb[0].mxu0 %v669
        %v1477 = vpop.f32.mrb[0].mxu0
        %v1478 = vadd.f32 0.0, %v1477
        %v1479 = vpop.f32.mrb[0].mxu0
        %1480 = vmatprep.mubr.f32.mxu0 0.0
        %1481 = vmatmul.mubr.f32.gmra.mrb[0].mxu0 %v671
        %v1482 = vpop.f32.mrb[0].mxu0
        %v1483 = vadd.f32 0.0, %v1482
        %v1484 = vpop.f32.mrb[0].mxu0
        %1485 = vmatprep.mubr.f32.mxu0 0.0
        %1486 = vmatmul.mubr.f32.gmra.mrb[0].mxu0 %v673
        %v1487 = vpop.f32.mrb[0].mxu0
        %v1488 = vadd.f32 0.0, %v1487
        %v1489 = vpop.f32.mrb[0].mxu0
        %1490 = vmatprep.mubr.f32.mxu0 0.0
        %1491 = vmatmul.mubr.f32.gmra.mrb[0].mxu0 %v675
        %v1492 = vpop.f32.mrb[0].mxu0
        %v1493 = vadd.f32 0.0, %v1492
        %v1494 = vpop.f32.mrb[0].mxu0
        %1495 = vmatprep.mubr.f32.mxu0 0.0
        %1496 = vmatmul.mubr.f32.gmra.mrb[0].mxu0 %v1037
        %v1497 = vpop.f32.mrb[0].mxu0
        %v1498 = vadd.f32 0.0, %v1497
        %v1499 = vpop.f32.mrb[0].mxu0
        %1500 = vmatprep.mubr.f32.mxu0 0.0
        %1501 = vmatmul.mubr.f32.gmra.mrb[0].mxu0 %v1399
        %v1502 = vpop.f32.mrb[0].mxu0
        %v1503 = vadd.f32 0.0, %v1502
        %v1504 = vpop.f32.mrb[0].mxu0
        %1505 = vdwg.mxu0
        %v1506 = vadd.f32 %v1385, %v1468
        %v1507 = vadd.f32 %v1386, %v1473
        %v1508 = vadd.f32 %v1387, %v1478
        %v1509 = vadd.f32 %v1388, %v1483
        %v1510 = vadd.f32 %v1389, %v1488
        %v1511 = vadd.f32 %v1390, %v1493
        %v1512 = vadd.f32 %v1391, %v1498
        %v1513 = vadd.f32 %v1392, %v1503
        %v1514 = vld [vmem:[%s323] sm:$0x1]
        %v1515 = vld [vmem:[%s323 + $0x1] sm:$0x1]
        %v1516 = vlaneseq
        %v1517 = vshrl.u32 %v1516, 7
        %v1518 = vsub.s32 0, %v1517
        %v1519 = vrot.slane %v1514, %v1518
        %v1520 = vmul.f32 %v1519, %v1506
        %v1521 = vmul.f32 %v1519, %v1507
        %v1522 = vmul.f32 %v1519, %v1508
        %v1523 = vmul.f32 %v1519, %v1509
        %v1524 = vmul.f32 %v1519, %v1510
        %v1525 = vmul.f32 %v1519, %v1511
        %v1526 = vmul.f32 %v1519, %v1512
        %v1527 = vmul.f32 %v1519, %v1513
        %v1528 = vlaneseq
        %v1529 = vshrl.u32 %v1528, 7
        %v1530 = vsub.s32 0, %v1529
        %v1531 = vrot.slane %v1515, %v1530
        %v1532 = vadd.f32 %v1520, %v1531
        %v1533 = vadd.f32 %v1521, %v1531
        %v1534 = vadd.f32 %v1522, %v1531
        %v1535 = vadd.f32 %v1523, %v1531
        %v1536 = vadd.f32 %v1524, %v1531
        %v1537 = vadd.f32 %v1525, %v1531
        %v1538 = vadd.f32 %v1526, %v1531
        %v1539 = vadd.f32 %v1527, %v1531
        %v1540 = vmul.f32 %v1532, 0.2
        %v1541 = vmul.f32 %v1533, 0.2
        %v1542 = vmul.f32 %v1534, 0.2
        %v1543 = vmul.f32 %v1535, 0.2
        %v1544 = vmul.f32 %v1536, 0.2
        %v1545 = vmul.f32 %v1537, 0.2
        %v1546 = vmul.f32 %v1538, 0.2
        %v1547 = vmul.f32 %v1539, 0.2
        %v1548 = vmax.f32 %v1532, %v1540
        %v1549 = vmax.f32 %v1533, %v1541
        %v1550 = vmax.f32 %v1534, %v1542
        %v1551 = vmax.f32 %v1535, %v1543
        %v1552 = vmax.f32 %v1536, %v1544
        %v1553 = vmax.f32 %v1537, %v1545
        %v1554 = vmax.f32 %v1538, %v1546
        %v1555 = vmax.f32 %v1539, %v1547
        %1556 = vxpose.xlu0.b32.start [1/16] %v1548, 128
        %1557 = vxpose.xlu0.b32.cont [2/16] %v1549, 128
        %1558 = vxpose.xlu0.b32.cont [3/16] %v1550, 128
        %1559 = vxpose.xlu0.b32.cont [4/16] %v1551, 128
        %1560 = vxpose.xlu0.b32.cont [5/16] %v1552, 128
        %1561 = vxpose.xlu0.b32.cont [6/16] %v1553, 128
        %1562 = vxpose.xlu0.b32.cont [7/16] %v1554, 128
        %1563 = vxpose.xlu0.b32.cont [8/16] %v1555, 128
        %1564 = vxpose.xlu0.b32.cont [9/16] 0.0, 128
        %1565 = vxpose.xlu0.b32.cont [10/16] 0.0, 128
        %1566 = vxpose.xlu0.b32.cont [11/16] 0.0, 128
        %1567 = vxpose.xlu0.b32.cont [12/16] 0.0, 128
        %1568 = vxpose.xlu0.b32.cont [13/16] 0.0, 128
        %1569 = vxpose.xlu0.b32.cont [14/16] 0.0, 128
        %1570 = vxpose.xlu0.b32.cont [15/16] 0.0, 128
        %1571 = vxpose.xlu0.b32.end [16/16] 0.0, 128
        %v1572 = vpop.trf.xlu0
        %v1573 = vpop.trf.xlu0
        %v1574 = vpop.trf.xlu0
        %v1575 = vpop.trf.xlu0
        %v1576 = vpop.trf.xlu0
        %v1577 = vpop.trf.xlu0
        %v1578 = vpop.trf.xlu0
        %v1579 = vpop.trf.xlu0
        %v1580 = vpop.trf.xlu0
        %v1581 = vpop.trf.xlu0
        %v1582 = vpop.trf.xlu0
        %v1583 = vpop.trf.xlu0
        %v1584 = vpop.trf.xlu0
        %v1585 = vpop.trf.xlu0
        %v1586 = vpop.trf.xlu0
        %v1587 = vpop.trf.xlu0
        %vm1588 = vcmask 523264
        %1589 = vst.msk [vmem:[%s283] sm:$0xff] %vm1588, %v1572
        %s1590 = sand.u32 %s147, 1
        %s1591 = scalar_lea.sflag [#allocation3], %s1590
        %s1592 = sand.u32 %s147, 1
        %s1593 = smul.addr %s1592, 8
        %s1594 = scalar_lea.vmem [#allocation2], %s1593
        // Predicated region
        $region37: #{tpu_custom_call.1} parent=35 // pred_check
          %p1595 = pneg %p157
        $region38: #{tpu_custom_call.1} parent=35 // pred_check_branch
          %1597 = sbr.rel (%p1595) target = $region40
        $region39: #{tpu_custom_call.1} parent=35 // pred_region
          %s1599 = ssub.s32 128, 128
          %1600 = vsyncadd %s1591, %s1599
          %s1601 = sadd.s32 %s23, %s22
          %s1602 = smul.addr %s1601, 128
          %s1603 = scalar_lea.hbm %s4, %s1602
          %s1605 = sshll.u32 %s1594, 4
          %s1606 = int_to_ptr.vmem [resolvable:$true] %s1605
          %1608 = dma.vmem_to_hbm [thread:$0]  %s1606, 128, %s1603, %s1591
        $region40: #{tpu_custom_call.1} parent=35 // pred_fallthru
          _
      $region36: #{tpu_custom_call.1} parent=5 // pred_fallthru
        _
      %p1609 = scmp.le.s32.totalorder 2, %s13
      // Predicated region
      $region41: #{tpu_custom_call.1} parent=5 // pred_check
        %p1610 = pneg %p1609
      $region42: #{tpu_custom_call.1} parent=5 // pred_check_branch
        %1612 = sbr.rel (%p1610) target = $region44
      $region43: #{tpu_custom_call.1} parent=5 // pred_region
        %s1613 = ssub.s32 %s13, 2
        // Predicated region
        $region45: #{tpu_custom_call.1} parent=43 // pred_check
          %p1614 = pneg %p163
        $region46: #{tpu_custom_call.1} parent=43 // pred_check_branch
          %1616 = sbr.rel (%p1614) target = $region48
        $region47: #{tpu_custom_call.1} parent=43 // pred_region
          %s1617 = sand.u32 %s148, 1
          %s1618 = scalar_lea.sflag [#allocation3], %s1617
          %s1619 = sand.u32 %s148, 1
          %s1620 = smul.addr %s1619, 8
          %s1621 = scalar_lea.vmem [#allocation2], %s1620
          %1622 = dma.done %s1618, 128
        $region48: #{tpu_custom_call.1} parent=43 // pred_fallthru
          _
      $region44: #{tpu_custom_call.1} parent=5 // pred_fallthru
        _
    $region6: #{tpu_custom_call.1} parent=1 // loop_footer
      %s17 = sadd.s32 1, %s13
    $region7: #{tpu_custom_call.1} parent=1 // loop_footer_branch
      %12 = sbr.rel target = $region3
    $region8: #{tpu_custom_call.1} parent=1 // loop_exit
      _
    %1623 = vsyncpa [#allocation3], 1
    %s1624 = scalar_lea.sflag [#allocation3], 1
    %1625 = vsyncpa %s1624, 1

</llo_original>
